<compile_context>
chip_gen: v7x
topology: tpu7x:2x2x1
jax: 0.10.0
libtpu: 0.0.40
codegen_flags: <defaults>
</compile_context>

<pallas_src>
import jax
import jax.numpy as jnp
from jax import lax
from jax.experimental import pallas as pl
from jax.experimental.pallas import tpu as pltpu


# ---------------------------------------------------------------------------
# Kernel
# ---------------------------------------------------------------------------
def cross_attention_kernel(q_ref, k_ref, v_ref, wqs_ref, wk_ref, wv_ref,
                           wo_ref, b_ref, o_ref,
                           q_scr, sc_scr, acc_scr, m_scr, l_scr):
  """Grid = (batch blocks, Lk chunks); online softmax over the Lk axis."""
  bb, lq, dq = q_ref.shape
  _, tk, dk = k_ref.shape
  hp = o_ref.shape[-1]
  kstep = pl.program_id(1)

  @pl.when(kstep == 0)
  def _():
    # Fused Q + shortcut projection over flattened (bb*lq) rows.  The
    # 1/sqrt(H) score scale is folded into the Q half of the weight/bias.
    q2 = q_ref[...].reshape(bb * lq, dq)
    qs = jnp.dot(q2, wqs_ref[...], preferred_element_type=jnp.float32)
    qs = qs + b_ref[0:1, :]
    q_scr[...] = qs[:, :hp].reshape(bb, lq, hp).astype(q_scr.dtype)
    sc_scr[...] = qs[:, hp:]                       # shortcut, kept in f32
    m_scr[...] = jnp.full(m_scr.shape, -jnp.inf, m_scr.dtype)
    l_scr[...] = jnp.zeros(l_scr.shape, l_scr.dtype)
    acc_scr[...] = jnp.zeros(acc_scr.shape, acc_scr.dtype)

  # K / V projection of this key chunk; cast back to the activation dtype so
  # the score and P@V matmuls run at full (bf16) MXU throughput.
  k2 = k_ref[...].reshape(bb * tk, dk)
  v2 = v_ref[...].reshape(bb * tk, dk)
  k_proj = (jnp.dot(k2, wk_ref[...], preferred_element_type=jnp.float32)
            + b_ref[1:2, :hp]).astype(q_scr.dtype).reshape(bb, tk, hp)
  v_proj = (jnp.dot(v2, wv_ref[...], preferred_element_type=jnp.float32)
            + b_ref[1:2, hp:]).astype(q_scr.dtype).reshape(bb, tk, hp)

  # Batched scores: contract the hidden dim directly (no K transpose).
  s = lax.dot_general(q_scr[...], k_proj, (((2,), (2,)), ((0,), (0,))),
                      preferred_element_type=jnp.float32)      # (bb, lq, tk)

  # Online softmax (un-normalized; normalization deferred to the last step).
  m_prev = m_scr[...]
  m_new = jnp.maximum(m_prev, jnp.max(s, axis=-1, keepdims=True))
  alpha = jnp.exp(m_prev - m_new)
  p = jnp.exp(s - m_new)
  l_scr[...] = alpha * l_scr[...] + jnp.sum(p, axis=-1, keepdims=True)
  pv = lax.dot_general(p.astype(q_scr.dtype), v_proj,
                       (((2,), (1,)), ((0,), (0,))),
                       preferred_element_type=jnp.float32)     # (bb, lq, hp)
  acc_scr[...] = alpha * acc_scr[...] + pv
  m_scr[...] = m_new

  @pl.when(kstep == pl.num_programs(1) - 1)
  def _():
    # Deferred normalization on (Lq, Hp), not on the (Lq, Lk) weights.
    inv_l = pl.reciprocal(l_scr[...], approx=True)
    attn = (acc_scr[...] * inv_l).astype(q_scr.dtype).reshape(bb * lq, hp)
    out = jnp.dot(attn, wo_ref[...], preferred_element_type=jnp.float32)
    out = out + b_ref[2:3, :hp] + sc_scr[...]
    o_ref[...] = out.reshape(bb, lq, hp).astype(o_ref.dtype)


# ---------------------------------------------------------------------------
# Tiling heuristics
# ---------------------------------------------------------------------------
def _tpu_caps():
  """(usable VMEM budget cap in bytes, number of TensorCores per chip)."""
  try:
    kind = jax.devices()[0].device_kind.lower()
  except Exception:  # pragma: no cover
    kind = ""
  num_tc = 2 if ("v7" in kind or "7x" in kind) else 1
  try:
    vmem_phys = int(pltpu.get_tpu_info().vmem_capacity_bytes)
  except Exception:  # pragma: no cover
    vmem_phys = (64 if num_tc >= 2 else 128) * 2**20
  # Leave headroom below physical VMEM for the compiler's own scratch.
  cap = min(int(0.80 * vmem_phys), (56 if num_tc >= 2 else 100) * 2**20)
  return cap, num_tc


def _choose_block_k(lk, max_tk=512):
  """Key-chunk size: multiple of 8 dividing Lk, capped for VMEM."""
  if lk <= max_tk:
    return lk
  for tk in range(max_tk, 7, -1):
    if lk % tk == 0 and tk % 8 == 0:
      return tk
  return lk  # TODO(synk): ragged Lk — falls back to a single un-tiled chunk.


def _vmem_footprint(bb, lq, tk, dq, dk, hp, act_bytes, w_bytes):
  """Rough per-step VMEM bytes (conservative: weights double-buffered)."""
  f32 = 4
  io = 2 * bb * (lq * dq + 2 * tk * dk) * act_bytes          # pipelined inputs
  io += 2 * bb * lq * hp * act_bytes                         # pipelined output
  w = 2 * (dq * 2 * hp + 2 * dk * hp + hp * hp + 8 * 2 * hp) * w_bytes
  scratch = bb * lq * (hp * act_bytes + 2 * hp * f32 + 2 * f32)
  tmp = (bb * max(lq * 2 * hp, 2 * tk * hp) * f32            # f32 projections
         + bb * lq * tk * f32                                # score chunk
         + bb * (lq + tk) * hp * act_bytes)                  # k/v/attn casts
  return io + w + scratch + tmp


def _choose_block_b(batch, lq, footprint_fn, vmem_budget, num_tc):
  divisors = sorted(d for d in range(1, batch + 1) if batch % d == 0)
  fitting = [d for d in divisors if footprint_fn(d) <= vmem_budget] or [1]
  if num_tc >= 2 and batch >= 2:
    # Dual-TensorCore (v7x): keep >= 2-3 grid steps per core so the next
    # step's DMAs overlap compute, but never fewer than num_tc steps.
    pref, mins = min(batch, 3 * num_tc), min(batch, num_tc)
    cands = ([d for d in fitting if batch // d >= pref]
             or [d for d in fitting if batch // d >= mins] or fitting)
  else:
    # Single TensorCore (v5e/v6e): maximize MXU rows, ~512 rows per step.
    cands = [d for d in fitting if d * lq <= 512] or fitting[:1]
  return max(cands)


# ---------------------------------------------------------------------------
# Wrapper
# ---------------------------------------------------------------------------
def cross_attention(query, key, value, params, *, block_b=None, block_k=None):
  """query (B,Lq,Dq), key/value (B,Lk,Dk) -> (B,Lq,H)."""
  B, Lq, Dq = query.shape
  _, Lk, Dk = key.shape
  H = params["wq"].shape[1]
  Hp = ((H + 127) // 128) * 128            # lane-dense padded hidden dim
  Lq_p = ((Lq + 7) // 8) * 8               # sublane-aligned query length
  wdt = params["wq"].dtype
  act_dt = query.dtype

  if Lq_p != Lq:                           # zero-pad query rows (exact; sliced)
    query = jnp.pad(query, ((0, 0), (0, Lq_p - Lq), (0, 0)))

  if block_k is None:
    block_k = _choose_block_k(Lk)
  assert Lk % block_k == 0, f"block_k={block_k} must divide Lk={Lk}"

  vmem_cap, num_tc = _tpu_caps()
  foot = lambda bb: _vmem_footprint(bb, Lq_p, block_k, Dq, Dk, Hp,
                                    jnp.dtype(act_dt).itemsize,
                                    jnp.dtype(wdt).itemsize)
  if block_b is None:
    block_b = _choose_block_b(B, Lq_p, foot, int(0.75 * vmem_cap), num_tc)
  assert B % block_b == 0, f"block_b={block_b} must divide batch={B}"
  vmem_limit = int(min(vmem_cap, max(1.5 * foot(block_b), 32 * 2**20)))

  # ---- setup-time weight packing (zero padding is numerically exact) ----
  scale = jnp.asarray(1.0 / (float(H) ** 0.5), wdt)

  def pad_w(w):
    return jnp.pad(w, ((0, 0), (0, Hp - H)))

  # [wq*scale | ws] -> scaled Q and the residual shortcut from one matmul.
  w_qs = jnp.concatenate([pad_w(params["wq"] * scale),
                          pad_w(params["ws"])], axis=1)          # (Dq, 2Hp)
  w_k = pad_w(params["wk"])                                      # (Dk, Hp)
  w_v = pad_w(params["wv"])                                      # (Dk, Hp)
  w_o = jnp.pad(params["wo"], ((0, Hp - H), (0, Hp - H)))        # (Hp, Hp)

  # All five biases packed into a single (8, 2*Hp) tile.
  b_all = jnp.zeros((8, 2 * Hp), wdt)
  b_all = b_all.at[0, :H].set(params["bq"] * scale)
  b_all = b_all.at[0, Hp:Hp + H].set(params["bs"])
  b_all = b_all.at[1, :H].set(params["bk"])
  b_all = b_all.at[1, Hp:Hp + H].set(params["bv"])
  b_all = b_all.at[2, :H].set(params["bo"])

  flops = (2 * B * Lq_p * Dq * (2 * Hp)            # Q + shortcut projection
           + 2 * B * Lk * Dk * Hp * 2              # K and V projections
           + 2 * B * Lq_p * Lk * Hp * 2            # scores + P@V
           + 2 * B * Lq_p * Hp * Hp)               # output projection
  bytes_accessed = (
      (B * Lq_p * Dq + 2 * B * Lk * Dk + B * Lq_p * Hp)
      * jnp.dtype(act_dt).itemsize
      + (Dq * 2 * Hp + 2 * Dk * Hp + Hp * Hp + 8 * 2 * Hp)
      * jnp.dtype(wdt).itemsize)
  cost = pl.CostEstimate(flops=flops, transcendentals=B * Lq_p * Lk,
                         bytes_accessed=bytes_accessed)

  grid = (B // block_b, Lk // block_k)

  def build(single_buffer_weights):
    if single_buffer_weights:
      def wspec(r, c):
        return pl.BlockSpec((r, c), lambda b, k: (0, 0),
                            pipeline_mode=pl.Buffered(1))
    else:
      def wspec(r, c):
        return pl.BlockSpec((r, c), lambda b, k: (0, 0))

    grid_spec = pltpu.PrefetchScalarGridSpec(
        num_scalar_prefetch=0,
        grid=grid,
        in_specs=[
            pl.BlockSpec((block_b, Lq_p, Dq), lambda b, k: (b, 0, 0)),   # q
            pl.BlockSpec((block_b, block_k, Dk), lambda b, k: (b, k, 0)),  # k
            pl.BlockSpec((block_b, block_k, Dk), lambda b, k: (b, k, 0)),  # v
            wspec(Dq, 2 * Hp),       # [wq*scale | ws]
            wspec(Dk, Hp),           # wk
            wspec(Dk, Hp),           # wv
            wspec(Hp, Hp),           # wo
            wspec(8, 2 * Hp),        # packed biases
        ],
        out_specs=pl.BlockSpec((block_b, Lq_p, Hp), lambda b, k: (b, 0, 0)),
        scratch_shapes=[
            pltpu.VMEM((block_b, Lq_p, Hp), act_dt),          # scaled Q
            pltpu.VMEM((block_b * Lq_p, Hp), jnp.float32),    # shortcut
            pltpu.VMEM((block_b, Lq_p, Hp), jnp.float32),     # attn accum
            pltpu.VMEM((block_b, Lq_p, 1), jnp.float32),      # running max
            pltpu.VMEM((block_b, Lq_p, 1), jnp.float32),      # running sum
        ],
    )
    return pl.pallas_call(
        cross_attention_kernel,
        out_shape=jax.ShapeDtypeStruct((B, Lq_p, Hp), act_dt),
        grid_spec=grid_spec,
        compiler_params=pltpu.CompilerParams(
            dimension_semantics=("parallel", "arbitrary"),
            vmem_limit_bytes=vmem_limit),
        cost_estimate=cost,
    )

  args = (query, key, value, w_qs, w_k, w_v, w_o, b_all)
  try:
    out = build(single_buffer_weights=True)(*args)
  except Exception:
    # TODO(synk): pl.Buffered(1) single-buffering of grid-invariant weights is
    # a VMEM-only optimization; fall back if this JAX build rejects it.
    out = build(single_buffer_weights=False)(*args)

  # Only pay for the un-pad slice when padding was actually added.
  if Lq_p != Lq:
    out = out[:, :Lq, :]
  if Hp != H:
    out = out[..., :H]
  return out


# ---------------------------------------------------------------------------
# Parameter init + pure-JAX reference
# ---------------------------------------------------------------------------
def _spectral_normalize(w):
  # Exact spectral norm (largest singular value); deterministic setup glue.
  # TODO(synk): torch.nn.utils.spectral_norm uses a power-iteration running
  # estimate; exact SVD differs slightly from a real PyTorch checkpoint.
  sigma = jnp.linalg.svd(w, compute_uv=False)[0]
  return w / sigma


def init_params(key, query_dim, key_value_dim, hidden_dim, dtype=jnp.float32):
  ks = jax.random.split(key, 10)

  def linear(kw, kb, d_in, d_out):
    bound = 1.0 / jnp.sqrt(jnp.float32(d_in))
    w = jax.random.uniform(kw, (d_in, d_out), dtype, -bound, bound)
    b = jax.random.uniform(kb, (d_out,), dtype, -bound, bound)
    return _spectral_normalize(w), b

  wq, bq = linear(ks[0], ks[1], query_dim, hidden_dim)
  wk, bk = linear(ks[2], ks[3], key_value_dim, hidden_dim)
  wv, bv = linear(ks[4], ks[5], key_value_dim, hidden_dim)
  wo, bo = linear(ks[6], ks[7], hidden_dim, hidden_dim)
  ws, bs = linear(ks[8], ks[9], query_dim, hidden_dim)
  return dict(wq=wq, bq=bq, wk=wk, bk=bk, wv=wv, bv=bv,
              wo=wo, bo=bo, ws=ws, bs=bs)


def cross_attention_ref(query, key, value, params):
  """Pure-JAX reference mirroring the PyTorch forward."""
  Q = query @ params["wq"] + params["bq"]
  K = key @ params["wk"] + params["bk"]
  V = value @ params["wv"] + params["bv"]
  s = jnp.einsum("bqh,bkh->bqk", Q, K) / jnp.sqrt(jnp.float32(K.shape[-1]))
  p = jax.nn.softmax(s, axis=-1)
  attn = jnp.einsum("bqk,bkh->bqh", p, V)
  out = attn @ params["wo"] + params["bo"]
  out = out + (query @ params["ws"] + params["bs"])
  return out


if __name__ == "__main__":
  # Small shapes consistent with the module (query_dim, key_value_dim, hidden).
  B, Lq, Lk = 2, 8, 8
  QUERY_DIM, KV_DIM, HIDDEN_DIM = 32, 16, 32

  root = jax.random.PRNGKey(0)
  kq, kk, kval, kp = jax.random.split(root, 4)

  query = jax.random.normal(kq, (B, Lq, QUERY_DIM), jnp.float32)
  key = jax.random.normal(kk, (B, Lk, KV_DIM), jnp.float32)
  value = jax.random.normal(kval, (B, Lk, KV_DIM), jnp.float32)

  params = init_params(kp, QUERY_DIM, KV_DIM, HIDDEN_DIM)

  out = cross_attention(query, key, value, params)
  out = jax.block_until_ready(out)

  ref = cross_attention_ref(query, key, value, params)
  assert out.shape == (B, Lq, HIDDEN_DIM)
  # Tolerance accounts for the EUP approximate reciprocal in the deferred
  # softmax normalization (~2^-12 relative error).
  assert jnp.allclose(out, ref, atol=2e-3, rtol=2e-3), \
      float(jnp.max(jnp.abs(out - ref)))

  print("KERNEL_OK")
</pallas_src>

<mosaic_0001>
module attributes {stable_mosaic.version = 11 : i64} {
  func.func @cross_attention_kernel(%arg0: i32, %arg1: i32, %arg2: memref<2x8x32xf32, #tpu.memory_space<vmem>>, %arg3: memref<2x8x16xf32, #tpu.memory_space<vmem>>, %arg4: memref<2x8x16xf32, #tpu.memory_space<vmem>>, %arg5: memref<32x256xf32, #tpu.memory_space<vmem>>, %arg6: memref<16x128xf32, #tpu.memory_space<vmem>>, %arg7: memref<16x128xf32, #tpu.memory_space<vmem>>, %arg8: memref<128x128xf32, #tpu.memory_space<vmem>>, %arg9: memref<8x256xf32, #tpu.memory_space<vmem>>, %arg10: memref<2x8x128xf32, #tpu.memory_space<vmem>>, %arg11: memref<2x8x128xf32, #tpu.memory_space<vmem>>, %arg12: memref<16x128xf32, #tpu.memory_space<vmem>>, %arg13: memref<2x8x128xf32, #tpu.memory_space<vmem>>, %arg14: memref<2x8x1xf32, #tpu.memory_space<vmem>>, %arg15: memref<2x8x1xf32, #tpu.memory_space<vmem>>) attributes {dimension_semantics = [#tpu.dimension_semantics<parallel>, #tpu.dimension_semantics<arbitrary>], iteration_bounds = array<i64: 1, 1>, scalar_prefetch = 0 : i64, scratch_operands = 5 : i64, tpu.core_type = #tpu.core_type<tc>, window_params = [{transform_indices = @transform_0, window_bounds = array<i64: 2, 8, 32>}, {transform_indices = @transform_1, window_bounds = array<i64: 2, 8, 16>}, {transform_indices = @transform_2, window_bounds = array<i64: 2, 8, 16>}, {pipeline_mode = #tpu.pipeline_mode<synchronous>, transform_indices = @transform_3, window_bounds = array<i64: 32, 256>}, {pipeline_mode = #tpu.pipeline_mode<synchronous>, transform_indices = @transform_4, window_bounds = array<i64: 16, 128>}, {pipeline_mode = #tpu.pipeline_mode<synchronous>, transform_indices = @transform_5, window_bounds = array<i64: 16, 128>}, {pipeline_mode = #tpu.pipeline_mode<synchronous>, transform_indices = @transform_6, window_bounds = array<i64: 128, 128>}, {pipeline_mode = #tpu.pipeline_mode<synchronous>, transform_indices = @transform_7, window_bounds = array<i64: 8, 256>}, {transform_indices = @transform_8, window_bounds = array<i64: 2, 8, 128>}]} {
    %c0_i32 = arith.constant 0 : i32
    %0 = arith.cmpi eq, %arg1, %c0_i32 : i32
    %1 = arith.extui %0 : i1 to i32
    %c0_i32_0 = arith.constant 0 : i32
    %2 = arith.cmpi ne, %1, %c0_i32_0 : i32
    scf.if %2 {
      %c0_40 = arith.constant 0 : index
      %c0_41 = arith.constant 0 : index
      %c0_42 = arith.constant 0 : index
      %46 = vector.load %arg2[%c0_40, %c0_41, %c0_42] : memref<2x8x32xf32, #tpu.memory_space<vmem>>, vector<2x8x32xf32>
      %47 = vector.shape_cast %46 : vector<2x8x32xf32> to vector<16x32xf32>
      %c0_43 = arith.constant 0 : index
      %c0_44 = arith.constant 0 : index
      %48 = vector.load %arg5[%c0_43, %c0_44] : memref<32x256xf32, #tpu.memory_space<vmem>>, vector<32x256xf32>
      %cst_45 = arith.constant dense<0.000000e+00> : vector<16x256xf32>
      %49 = tpu.matmul %47, %48, %cst_45 {dimension_numbers = #tpu.dot_dimension_numbers<[1], [0], [0], [1], [0, 0, 1, 1], [], []>} : vector<16x32xf32>, vector<32x256xf32>, vector<16x256xf32> -> vector<16x256xf32>
      %c0_46 = arith.constant 0 : index
      %c0_47 = arith.constant 0 : index
      %50 = vector.load %arg9[%c0_46, %c0_47] : memref<8x256xf32, #tpu.memory_space<vmem>>, vector<1x256xf32>
      %51 = vector.broadcast %50 : vector<1x256xf32> to vector<16x256xf32>
      %52 = arith.addf %49, %51 : vector<16x256xf32>
      %53 = vector.extract_strided_slice %52 {offsets = [0, 0], sizes = [16, 128], strides = [1, 1]} : vector<16x256xf32> to vector<16x128xf32>
      %54 = vector.shape_cast %53 : vector<16x128xf32> to vector<2x8x128xf32>
      %c0_48 = arith.constant 0 : index
      %c0_49 = arith.constant 0 : index
      %c0_50 = arith.constant 0 : index
      %55 = vector.load %arg11[%c0_48, %c0_49, %c0_50] : memref<2x8x128xf32, #tpu.memory_space<vmem>>, vector<2x8x128xf32>
      tpu.vector_store %arg11[%c0_48, %c0_49, %c0_50], %54 {strides = array<i32>} : memref<2x8x128xf32, #tpu.memory_space<vmem>>, vector<2x8x128xf32>,
      %56 = vector.extract_strided_slice %52 {offsets = [0, 128], sizes = [16, 128], strides = [1, 1]} : vector<16x256xf32> to vector<16x128xf32>
      %c0_51 = arith.constant 0 : index
      %c0_52 = arith.constant 0 : index
      %57 = vector.load %arg12[%c0_51, %c0_52] : memref<16x128xf32, #tpu.memory_space<vmem>>, vector<16x128xf32>
      tpu.vector_store %arg12[%c0_51, %c0_52], %56 {strides = array<i32>} : memref<16x128xf32, #tpu.memory_space<vmem>>, vector<16x128xf32>,
      %cst_53 = arith.constant 0xFF800000 : f32
      %58 = vector.broadcast %cst_53 : f32 to vector<2x8x1xf32>
      %c0_54 = arith.constant 0 : index
      %c0_55 = arith.constant 0 : index
      %c0_56 = arith.constant 0 : index
      %59 = vector.load %arg14[%c0_54, %c0_55, %c0_56] : memref<2x8x1xf32, #tpu.memory_space<vmem>>, vector<2x8x1xf32>
      tpu.vector_store %arg14[%c0_54, %c0_55, %c0_56], %58 {strides = array<i32>} : memref<2x8x1xf32, #tpu.memory_space<vmem>>, vector<2x8x1xf32>,
      %cst_57 = arith.constant 0.000000e+00 : f32
      %60 = vector.broadcast %cst_57 : f32 to vector<2x8x1xf32>
      %c0_58 = arith.constant 0 : index
      %c0_59 = arith.constant 0 : index
      %c0_60 = arith.constant 0 : index
      %61 = vector.load %arg15[%c0_58, %c0_59, %c0_60] : memref<2x8x1xf32, #tpu.memory_space<vmem>>, vector<2x8x1xf32>
      tpu.vector_store %arg15[%c0_58, %c0_59, %c0_60], %60 {strides = array<i32>} : memref<2x8x1xf32, #tpu.memory_space<vmem>>, vector<2x8x1xf32>,
      %cst_61 = arith.constant 0.000000e+00 : f32
      %62 = vector.broadcast %cst_61 : f32 to vector<2x8x128xf32>
      %c0_62 = arith.constant 0 : index
      %c0_63 = arith.constant 0 : index
      %c0_64 = arith.constant 0 : index
      %63 = vector.load %arg13[%c0_62, %c0_63, %c0_64] : memref<2x8x128xf32, #tpu.memory_space<vmem>>, vector<2x8x128xf32>
      tpu.vector_store %arg13[%c0_62, %c0_63, %c0_64], %62 {strides = array<i32>} : memref<2x8x128xf32, #tpu.memory_space<vmem>>, vector<2x8x128xf32>,
    } else {
    }
    %c0 = arith.constant 0 : index
    %c0_1 = arith.constant 0 : index
    %c0_2 = arith.constant 0 : index
    %3 = vector.load %arg3[%c0, %c0_1, %c0_2] : memref<2x8x16xf32, #tpu.memory_space<vmem>>, vector<2x8x16xf32>
    %4 = vector.shape_cast %3 : vector<2x8x16xf32> to vector<16x16xf32>
    %c0_3 = arith.constant 0 : index
    %c0_4 = arith.constant 0 : index
    %c0_5 = arith.constant 0 : index
    %5 = vector.load %arg4[%c0_3, %c0_4, %c0_5] : memref<2x8x16xf32, #tpu.memory_space<vmem>>, vector<2x8x16xf32>
    %6 = vector.shape_cast %5 : vector<2x8x16xf32> to vector<16x16xf32>
    %c0_6 = arith.constant 0 : index
    %c0_7 = arith.constant 0 : index
    %7 = vector.load %arg6[%c0_6, %c0_7] : memref<16x128xf32, #tpu.memory_space<vmem>>, vector<16x128xf32>
    %cst = arith.constant dense<0.000000e+00> : vector<16x128xf32>
    %8 = tpu.matmul %4, %7, %cst {dimension_numbers = #tpu.dot_dimension_numbers<[1], [0], [0], [1], [0, 0, 1, 1], [], []>} : vector<16x16xf32>, vector<16x128xf32>, vector<16x128xf32> -> vector<16x128xf32>
    %c1 = arith.constant 1 : index
    %c0_8 = arith.constant 0 : index
    %9 = vector.load %arg9[%c1, %c0_8] : memref<8x256xf32, #tpu.memory_space<vmem>>, vector<1x128xf32>
    %10 = vector.broadcast %9 : vector<1x128xf32> to vector<16x128xf32>
    %11 = arith.addf %8, %10 : vector<16x128xf32>
    %12 = vector.shape_cast %11 : vector<16x128xf32> to vector<2x8x128xf32>
    %c0_9 = arith.constant 0 : index
    %c0_10 = arith.constant 0 : index
    %13 = vector.load %arg7[%c0_9, %c0_10] : memref<16x128xf32, #tpu.memory_space<vmem>>, vector<16x128xf32>
    %cst_11 = arith.constant dense<0.000000e+00> : vector<16x128xf32>
    %14 = tpu.matmul %6, %13, %cst_11 {dimension_numbers = #tpu.dot_dimension_numbers<[1], [0], [0], [1], [0, 0, 1, 1], [], []>} : vector<16x16xf32>, vector<16x128xf32>, vector<16x128xf32> -> vector<16x128xf32>
    %c1_12 = arith.constant 1 : index
    %c128 = arith.constant 128 : index
    %15 = vector.load %arg9[%c1_12, %c128] : memref<8x256xf32, #tpu.memory_space<vmem>>, vector<1x128xf32>
    %16 = vector.broadcast %15 : vector<1x128xf32> to vector<16x128xf32>
    %17 = arith.addf %14, %16 : vector<16x128xf32>
    %18 = vector.shape_cast %17 : vector<16x128xf32> to vector<2x8x128xf32>
    %c0_13 = arith.constant 0 : index
    %c0_14 = arith.constant 0 : index
    %c0_15 = arith.constant 0 : index
    %19 = vector.load %arg11[%c0_13, %c0_14, %c0_15] : memref<2x8x128xf32, #tpu.memory_space<vmem>>, vector<2x8x128xf32>
    %cst_16 = arith.constant dense<0.000000e+00> : vector<2x8x8xf32>
    %20 = tpu.matmul %19, %12, %cst_16 {dimension_numbers = #tpu.dot_dimension_numbers<[2], [2], [1], [1], [0, 0, 0, 1, 1, 1], [0], [0]>} : vector<2x8x128xf32>, vector<2x8x128xf32>, vector<2x8x8xf32> -> vector<2x8x8xf32>
    %c0_17 = arith.constant 0 : index
    %c0_18 = arith.constant 0 : index
    %c0_19 = arith.constant 0 : index
    %21 = vector.load %arg14[%c0_17, %c0_18, %c0_19] : memref<2x8x1xf32, #tpu.memory_space<vmem>>, vector<2x8x1xf32>
    %cst_20 = arith.constant dense<0xFF800000> : vector<2x8xf32>
    %22 = vector.multi_reduction <maximumf>, %20, %cst_20 [2] : vector<2x8x8xf32> to vector<2x8xf32>
    %23 = vector.shape_cast %22 : vector<2x8xf32> to vector<2x8x1xf32>
    %24 = arith.maximumf %21, %23 : vector<2x8x1xf32>
    %25 = arith.subf %21, %24 : vector<2x8x1xf32>
    %26 = math.exp %25 : vector<2x8x1xf32>
    %27 = vector.broadcast %24 : vector<2x8x1xf32> to vector<2x8x8xf32>
    %28 = arith.subf %20, %27 : vector<2x8x8xf32>
    %29 = math.exp %28 : vector<2x8x8xf32>
    %c0_21 = arith.constant 0 : index
    %c0_22 = arith.constant 0 : index
    %c0_23 = arith.constant 0 : index
    %30 = vector.load %arg15[%c0_21, %c0_22, %c0_23] : memref<2x8x1xf32, #tpu.memory_space<vmem>>, vector<2x8x1xf32>
    %31 = arith.mulf %26, %30 : vector<2x8x1xf32>
    %cst_24 = arith.constant dense<0.000000e+00> : vector<2x8xf32>
    %32 = vector.multi_reduction <add>, %29, %cst_24 [2] : vector<2x8x8xf32> to vector<2x8xf32>
    %33 = vector.shape_cast %32 : vector<2x8xf32> to vector<2x8x1xf32>
    %34 = arith.addf %31, %33 : vector<2x8x1xf32>
    %c0_25 = arith.constant 0 : index
    %c0_26 = arith.constant 0 : index
    %c0_27 = arith.constant 0 : index
    %35 = vector.load %arg15[%c0_25, %c0_26, %c0_27] : memref<2x8x1xf32, #tpu.memory_space<vmem>>, vector<2x8x1xf32>
    tpu.vector_store %arg15[%c0_25, %c0_26, %c0_27], %34 {strides = array<i32>} : memref<2x8x1xf32, #tpu.memory_space<vmem>>, vector<2x8x1xf32>,
    %cst_28 = arith.constant dense<0.000000e+00> : vector<2x8x128xf32>
    %36 = tpu.matmul %29, %18, %cst_28 {dimension_numbers = #tpu.dot_dimension_numbers<[2], [1], [1], [2], [0, 0, 0, 1, 1, 2], [0], [0]>} : vector<2x8x8xf32>, vector<2x8x128xf32>, vector<2x8x128xf32> -> vector<2x8x128xf32>
    %c0_29 = arith.constant 0 : index
    %c0_30 = arith.constant 0 : index
    %c0_31 = arith.constant 0 : index
    %37 = vector.load %arg13[%c0_29, %c0_30, %c0_31] : memref<2x8x128xf32, #tpu.memory_space<vmem>>, vector<2x8x128xf32>
    %38 = vector.broadcast %26 : vector<2x8x1xf32> to vector<2x8x128xf32>
    %39 = arith.mulf %38, %37 : vector<2x8x128xf32>
    %40 = arith.addf %39, %36 : vector<2x8x128xf32>
    %c0_32 = arith.constant 0 : index
    %c0_33 = arith.constant 0 : index
    %c0_34 = arith.constant 0 : index
    %41 = vector.load %arg13[%c0_32, %c0_33, %c0_34] : memref<2x8x128xf32, #tpu.memory_space<vmem>>, vector<2x8x128xf32>
    tpu.vector_store %arg13[%c0_32, %c0_33, %c0_34], %40 {strides = array<i32>} : memref<2x8x128xf32, #tpu.memory_space<vmem>>, vector<2x8x128xf32>,
    %c0_35 = arith.constant 0 : index
    %c0_36 = arith.constant 0 : index
    %c0_37 = arith.constant 0 : index
    %42 = vector.load %arg14[%c0_35, %c0_36, %c0_37] : memref<2x8x1xf32, #tpu.memory_space<vmem>>, vector<2x8x1xf32>
    tpu.vector_store %arg14[%c0_35, %c0_36, %c0_37], %24 {strides = array<i32>} : memref<2x8x1xf32, #tpu.memory_space<vmem>>, vector<2x8x1xf32>,
    %c0_i32_38 = arith.constant 0 : i32
    %43 = arith.cmpi eq, %arg1, %c0_i32_38 : i32
    %44 = arith.extui %43 : i1 to i32
    %c0_i32_39 = arith.constant 0 : i32
    %45 = arith.cmpi ne, %44, %c0_i32_39 : i32
    scf.if %45 {
      %c0_40 = arith.constant 0 : index
      %c0_41 = arith.constant 0 : index
      %c0_42 = arith.constant 0 : index
      %46 = vector.load %arg15[%c0_40, %c0_41, %c0_42] : memref<2x8x1xf32, #tpu.memory_space<vmem>>, vector<2x8x1xf32>
      %47 = tpu.reciprocal %46 {approx = true} : vector<2x8x1xf32> -> vector<2x8x1xf32>
      %c0_43 = arith.constant 0 : index
      %c0_44 = arith.constant 0 : index
      %c0_45 = arith.constant 0 : index
      %48 = vector.load %arg13[%c0_43, %c0_44, %c0_45] : memref<2x8x128xf32, #tpu.memory_space<vmem>>, vector<2x8x128xf32>
      %49 = vector.broadcast %47 : vector<2x8x1xf32> to vector<2x8x128xf32>
      %50 = arith.mulf %48, %49 : vector<2x8x128xf32>
      %51 = vector.shape_cast %50 : vector<2x8x128xf32> to vector<16x128xf32>
      %c0_46 = arith.constant 0 : index
      %c0_47 = arith.constant 0 : index
      %52 = vector.load %arg8[%c0_46, %c0_47] : memref<128x128xf32, #tpu.memory_space<vmem>>, vector<128x128xf32>
      %cst_48 = arith.constant dense<0.000000e+00> : vector<16x128xf32>
      %53 = tpu.matmul %51, %52, %cst_48 {dimension_numbers = #tpu.dot_dimension_numbers<[1], [0], [0], [1], [0, 0, 1, 1], [], []>} : vector<16x128xf32>, vector<128x128xf32>, vector<16x128xf32> -> vector<16x128xf32>
      %c2 = arith.constant 2 : index
      %c0_49 = arith.constant 0 : index
      %54 = vector.load %arg9[%c2, %c0_49] : memref<8x256xf32, #tpu.memory_space<vmem>>, vector<1x128xf32>
      %55 = vector.broadcast %54 : vector<1x128xf32> to vector<16x128xf32>
      %56 = arith.addf %53, %55 : vector<16x128xf32>
      %c0_50 = arith.constant 0 : index
      %c0_51 = arith.constant 0 : index
      %57 = vector.load %arg12[%c0_50, %c0_51] : memref<16x128xf32, #tpu.memory_space<vmem>>, vector<16x128xf32>
      %58 = arith.addf %56, %57 : vector<16x128xf32>
      %59 = vector.shape_cast %58 : vector<16x128xf32> to vector<2x8x128xf32>
      %c0_52 = arith.constant 0 : index
      %c0_53 = arith.constant 0 : index
      %c0_54 = arith.constant 0 : index
      %60 = vector.load %arg10[%c0_52, %c0_53, %c0_54] : memref<2x8x128xf32, #tpu.memory_space<vmem>>, vector<2x8x128xf32>
      tpu.vector_store %arg10[%c0_52, %c0_53, %c0_54], %59 {strides = array<i32>} : memref<2x8x128xf32, #tpu.memory_space<vmem>>, vector<2x8x128xf32>,
    } else {
    }
    return
  }
  func.func @transform_0(%arg0: i32, %arg1: i32) -> (i32, i32, i32) {
    %c0_i32 = arith.constant 0 : i32
    %c0_i32_0 = arith.constant 0 : i32
    %c0_i32_1 = arith.constant 0 : i32
    return %arg0, %c0_i32, %c0_i32_0 : i32, i32, i32
  }
  func.func @transform_1(%arg0: i32, %arg1: i32) -> (i32, i32, i32) {
    %c0_i32 = arith.constant 0 : i32
    %c0_i32_0 = arith.constant 0 : i32
    return %arg0, %arg1, %c0_i32 : i32, i32, i32
  }
  func.func @transform_2(%arg0: i32, %arg1: i32) -> (i32, i32, i32) {
    %c0_i32 = arith.constant 0 : i32
    %c0_i32_0 = arith.constant 0 : i32
    return %arg0, %arg1, %c0_i32 : i32, i32, i32
  }
  func.func @transform_3(%arg0: i32, %arg1: i32) -> (i32, i32) {
    %c0_i32 = arith.constant 0 : i32
    %c0_i32_0 = arith.constant 0 : i32
    %c0_i32_1 = arith.constant 0 : i32
    return %c0_i32, %c0_i32_0 : i32, i32
  }
  func.func @transform_4(%arg0: i32, %arg1: i32) -> (i32, i32) {
    %c0_i32 = arith.constant 0 : i32
    %c0_i32_0 = arith.constant 0 : i32
    %c0_i32_1 = arith.constant 0 : i32
    return %c0_i32, %c0_i32_0 : i32, i32
  }
  func.func @transform_5(%arg0: i32, %arg1: i32) -> (i32, i32) {
    %c0_i32 = arith.constant 0 : i32
    %c0_i32_0 = arith.constant 0 : i32
    %c0_i32_1 = arith.constant 0 : i32
    return %c0_i32, %c0_i32_0 : i32, i32
  }
  func.func @transform_6(%arg0: i32, %arg1: i32) -> (i32, i32) {
    %c0_i32 = arith.constant 0 : i32
    %c0_i32_0 = arith.constant 0 : i32
    %c0_i32_1 = arith.constant 0 : i32
    return %c0_i32, %c0_i32_0 : i32, i32
  }
  func.func @transform_7(%arg0: i32, %arg1: i32) -> (i32, i32) {
    %c0_i32 = arith.constant 0 : i32
    %c0_i32_0 = arith.constant 0 : i32
    %c0_i32_1 = arith.constant 0 : i32
    return %c0_i32, %c0_i32_0 : i32, i32
  }
  func.func @transform_8(%arg0: i32, %arg1: i32) -> (i32, i32, i32) {
    %c0_i32 = arith.constant 0 : i32
    %c0_i32_0 = arith.constant 0 : i32
    %c0_i32_1 = arith.constant 0 : i32
    return %arg0, %c0_i32, %c0_i32_0 : i32, i32, i32
  }
}

module attributes {stable_mosaic.version = 11 : i64} {
  func.func @cross_attention_kernel(%arg0: i32, %arg1: i32, %arg2: memref<2x8x32xf32, #tpu.memory_space<vmem>>, %arg3: memref<2x8x16xf32, #tpu.memory_space<vmem>>, %arg4: memref<2x8x16xf32, #tpu.memory_space<vmem>>, %arg5: memref<32x256xf32, #tpu.memory_space<vmem>>, %arg6: memref<16x128xf32, #tpu.memory_space<vmem>>, %arg7: memref<16x128xf32, #tpu.memory_space<vmem>>, %arg8: memref<128x128xf32, #tpu.memory_space<vmem>>, %arg9: memref<8x256xf32, #tpu.memory_space<vmem>>, %arg10: memref<2x8x128xf32, #tpu.memory_space<vmem>>, %arg11: memref<2x8x128xf32, #tpu.memory_space<vmem>>, %arg12: memref<16x128xf32, #tpu.memory_space<vmem>>, %arg13: memref<2x8x128xf32, #tpu.memory_space<vmem>>, %arg14: memref<2x8x1xf32, #tpu.memory_space<vmem>>, %arg15: memref<2x8x1xf32, #tpu.memory_space<vmem>>) attributes {dimension_semantics = [#tpu.dimension_semantics<parallel>, #tpu.dimension_semantics<arbitrary>], iteration_bounds = array<i64: 1, 1>, scalar_prefetch = 0 : i64, scratch_operands = 5 : i64, tpu.core_type = #tpu.core_type<tc>, window_params = [{transform_indices = @transform_0, window_bounds = array<i64: 2, 8, 32>}, {transform_indices = @transform_1, window_bounds = array<i64: 2, 8, 16>}, {transform_indices = @transform_2, window_bounds = array<i64: 2, 8, 16>}, {pipeline_mode = #tpu.pipeline_mode<synchronous>, transform_indices = @transform_3, window_bounds = array<i64: 32, 256>}, {pipeline_mode = #tpu.pipeline_mode<synchronous>, transform_indices = @transform_4, window_bounds = array<i64: 16, 128>}, {pipeline_mode = #tpu.pipeline_mode<synchronous>, transform_indices = @transform_5, window_bounds = array<i64: 16, 128>}, {pipeline_mode = #tpu.pipeline_mode<synchronous>, transform_indices = @transform_6, window_bounds = array<i64: 128, 128>}, {pipeline_mode = #tpu.pipeline_mode<synchronous>, transform_indices = @transform_7, window_bounds = array<i64: 8, 256>}, {transform_indices = @transform_8, window_bounds = array<i64: 2, 8, 128>}]} {
    %c0_i32 = arith.constant 0 : i32
    %0 = arith.cmpi eq, %arg1, %c0_i32 : i32
    %1 = arith.extui %0 : i1 to i32
    %c0_i32_0 = arith.constant 0 : i32
    %2 = arith.cmpi ne, %1, %c0_i32_0 : i32
    scf.if %2 {
      %c0_40 = arith.constant 0 : index
      %c0_41 = arith.constant 0 : index
      %c0_42 = arith.constant 0 : index
      %46 = vector.load %arg2[%c0_40, %c0_41, %c0_42] : memref<2x8x32xf32, #tpu.memory_space<vmem>>, vector<2x8x32xf32>
      %47 = vector.shape_cast %46 : vector<2x8x32xf32> to vector<16x32xf32>
      %c0_43 = arith.constant 0 : index
      %c0_44 = arith.constant 0 : index
      %48 = vector.load %arg5[%c0_43, %c0_44] : memref<32x256xf32, #tpu.memory_space<vmem>>, vector<32x256xf32>
      %cst_45 = arith.constant dense<0.000000e+00> : vector<16x256xf32>
      %49 = tpu.matmul %47, %48, %cst_45 {dimension_numbers = #tpu.dot_dimension_numbers<[1], [0], [0], [1], [0, 0, 1, 1], [], []>} : vector<16x32xf32>, vector<32x256xf32>, vector<16x256xf32> -> vector<16x256xf32>
      %c0_46 = arith.constant 0 : index
      %c0_47 = arith.constant 0 : index
      %50 = vector.load %arg9[%c0_46, %c0_47] : memref<8x256xf32, #tpu.memory_space<vmem>>, vector<1x256xf32>
      %51 = vector.broadcast %50 : vector<1x256xf32> to vector<16x256xf32>
      %52 = arith.addf %49, %51 : vector<16x256xf32>
      %53 = vector.extract_strided_slice %52 {offsets = [0, 0], sizes = [16, 128], strides = [1, 1]} : vector<16x256xf32> to vector<16x128xf32>
      %54 = vector.shape_cast %53 : vector<16x128xf32> to vector<2x8x128xf32>
      %c0_48 = arith.constant 0 : index
      %c0_49 = arith.constant 0 : index
      %c0_50 = arith.constant 0 : index
      %55 = vector.load %arg11[%c0_48, %c0_49, %c0_50] : memref<2x8x128xf32, #tpu.memory_space<vmem>>, vector<2x8x128xf32>
      tpu.vector_store %arg11[%c0_48, %c0_49, %c0_50], %54 {strides = array<i32>} : memref<2x8x128xf32, #tpu.memory_space<vmem>>, vector<2x8x128xf32>,
      %56 = vector.extract_strided_slice %52 {offsets = [0, 128], sizes = [16, 128], strides = [1, 1]} : vector<16x256xf32> to vector<16x128xf32>
      %c0_51 = arith.constant 0 : index
      %c0_52 = arith.constant 0 : index
      %57 = vector.load %arg12[%c0_51, %c0_52] : memref<16x128xf32, #tpu.memory_space<vmem>>, vector<16x128xf32>
      tpu.vector_store %arg12[%c0_51, %c0_52], %56 {strides = array<i32>} : memref<16x128xf32, #tpu.memory_space<vmem>>, vector<16x128xf32>,
      %cst_53 = arith.constant 0xFF800000 : f32
      %58 = vector.broadcast %cst_53 : f32 to vector<2x8x1xf32>
      %c0_54 = arith.constant 0 : index
      %c0_55 = arith.constant 0 : index
      %c0_56 = arith.constant 0 : index
      %59 = vector.load %arg14[%c0_54, %c0_55, %c0_56] : memref<2x8x1xf32, #tpu.memory_space<vmem>>, vector<2x8x1xf32>
      tpu.vector_store %arg14[%c0_54, %c0_55, %c0_56], %58 {strides = array<i32>} : memref<2x8x1xf32, #tpu.memory_space<vmem>>, vector<2x8x1xf32>,
      %cst_57 = arith.constant 0.000000e+00 : f32
      %60 = vector.broadcast %cst_57 : f32 to vector<2x8x1xf32>
      %c0_58 = arith.constant 0 : index
      %c0_59 = arith.constant 0 : index
      %c0_60 = arith.constant 0 : index
      %61 = vector.load %arg15[%c0_58, %c0_59, %c0_60] : memref<2x8x1xf32, #tpu.memory_space<vmem>>, vector<2x8x1xf32>
      tpu.vector_store %arg15[%c0_58, %c0_59, %c0_60], %60 {strides = array<i32>} : memref<2x8x1xf32, #tpu.memory_space<vmem>>, vector<2x8x1xf32>,
      %cst_61 = arith.constant 0.000000e+00 : f32
      %62 = vector.broadcast %cst_61 : f32 to vector<2x8x128xf32>
      %c0_62 = arith.constant 0 : index
      %c0_63 = arith.constant 0 : index
      %c0_64 = arith.constant 0 : index
      %63 = vector.load %arg13[%c0_62, %c0_63, %c0_64] : memref<2x8x128xf32, #tpu.memory_space<vmem>>, vector<2x8x128xf32>
      tpu.vector_store %arg13[%c0_62, %c0_63, %c0_64], %62 {strides = array<i32>} : memref<2x8x128xf32, #tpu.memory_space<vmem>>, vector<2x8x128xf32>,
    } else {
    }
    %c0 = arith.constant 0 : index
    %c0_1 = arith.constant 0 : index
    %c0_2 = arith.constant 0 : index
    %3 = vector.load %arg3[%c0, %c0_1, %c0_2] : memref<2x8x16xf32, #tpu.memory_space<vmem>>, vector<2x8x16xf32>
    %4 = vector.shape_cast %3 : vector<2x8x16xf32> to vector<16x16xf32>
    %c0_3 = arith.constant 0 : index
    %c0_4 = arith.constant 0 : index
    %c0_5 = arith.constant 0 : index
    %5 = vector.load %arg4[%c0_3, %c0_4, %c0_5] : memref<2x8x16xf32, #tpu.memory_space<vmem>>, vector<2x8x16xf32>
    %6 = vector.shape_cast %5 : vector<2x8x16xf32> to vector<16x16xf32>
    %c0_6 = arith.constant 0 : index
    %c0_7 = arith.constant 0 : index
    %7 = vector.load %arg6[%c0_6, %c0_7] : memref<16x128xf32, #tpu.memory_space<vmem>>, vector<16x128xf32>
    %cst = arith.constant dense<0.000000e+00> : vector<16x128xf32>
    %8 = tpu.matmul %4, %7, %cst {dimension_numbers = #tpu.dot_dimension_numbers<[1], [0], [0], [1], [0, 0, 1, 1], [], []>} : vector<16x16xf32>, vector<16x128xf32>, vector<16x128xf32> -> vector<16x128xf32>
    %c1 = arith.constant 1 : index
    %c0_8 = arith.constant 0 : index
    %9 = vector.load %arg9[%c1, %c0_8] : memref<8x256xf32, #tpu.memory_space<vmem>>, vector<1x128xf32>
    %10 = vector.broadcast %9 : vector<1x128xf32> to vector<16x128xf32>
    %11 = arith.addf %8, %10 : vector<16x128xf32>
    %12 = vector.shape_cast %11 : vector<16x128xf32> to vector<2x8x128xf32>
    %c0_9 = arith.constant 0 : index
    %c0_10 = arith.constant 0 : index
    %13 = vector.load %arg7[%c0_9, %c0_10] : memref<16x128xf32, #tpu.memory_space<vmem>>, vector<16x128xf32>
    %cst_11 = arith.constant dense<0.000000e+00> : vector<16x128xf32>
    %14 = tpu.matmul %6, %13, %cst_11 {dimension_numbers = #tpu.dot_dimension_numbers<[1], [0], [0], [1], [0, 0, 1, 1], [], []>} : vector<16x16xf32>, vector<16x128xf32>, vector<16x128xf32> -> vector<16x128xf32>
    %c1_12 = arith.constant 1 : index
    %c128 = arith.constant 128 : index
    %15 = vector.load %arg9[%c1_12, %c128] : memref<8x256xf32, #tpu.memory_space<vmem>>, vector<1x128xf32>
    %16 = vector.broadcast %15 : vector<1x128xf32> to vector<16x128xf32>
    %17 = arith.addf %14, %16 : vector<16x128xf32>
    %18 = vector.shape_cast %17 : vector<16x128xf32> to vector<2x8x128xf32>
    %c0_13 = arith.constant 0 : index
    %c0_14 = arith.constant 0 : index
    %c0_15 = arith.constant 0 : index
    %19 = vector.load %arg11[%c0_13, %c0_14, %c0_15] : memref<2x8x128xf32, #tpu.memory_space<vmem>>, vector<2x8x128xf32>
    %cst_16 = arith.constant dense<0.000000e+00> : vector<2x8x8xf32>
    %20 = tpu.matmul %19, %12, %cst_16 {dimension_numbers = #tpu.dot_dimension_numbers<[2], [2], [1], [1], [0, 0, 0, 1, 1, 1], [0], [0]>} : vector<2x8x128xf32>, vector<2x8x128xf32>, vector<2x8x8xf32> -> vector<2x8x8xf32>
    %c0_17 = arith.constant 0 : index
    %c0_18 = arith.constant 0 : index
    %c0_19 = arith.constant 0 : index
    %21 = vector.load %arg14[%c0_17, %c0_18, %c0_19] : memref<2x8x1xf32, #tpu.memory_space<vmem>>, vector<2x8x1xf32>
    %cst_20 = arith.constant dense<0xFF800000> : vector<2x8xf32>
    %22 = vector.multi_reduction <maximumf>, %20, %cst_20 [2] : vector<2x8x8xf32> to vector<2x8xf32>
    %23 = vector.shape_cast %22 : vector<2x8xf32> to vector<2x8x1xf32>
    %24 = arith.maximumf %21, %23 : vector<2x8x1xf32>
    %25 = arith.subf %21, %24 : vector<2x8x1xf32>
    %26 = math.exp %25 : vector<2x8x1xf32>
    %27 = vector.broadcast %24 : vector<2x8x1xf32> to vector<2x8x8xf32>
    %28 = arith.subf %20, %27 : vector<2x8x8xf32>
    %29 = math.exp %28 : vector<2x8x8xf32>
    %c0_21 = arith.constant 0 : index
    %c0_22 = arith.constant 0 : index
    %c0_23 = arith.constant 0 : index
    %30 = vector.load %arg15[%c0_21, %c0_22, %c0_23] : memref<2x8x1xf32, #tpu.memory_space<vmem>>, vector<2x8x1xf32>
    %31 = arith.mulf %26, %30 : vector<2x8x1xf32>
    %cst_24 = arith.constant dense<0.000000e+00> : vector<2x8xf32>
    %32 = vector.multi_reduction <add>, %29, %cst_24 [2] : vector<2x8x8xf32> to vector<2x8xf32>
    %33 = vector.shape_cast %32 : vector<2x8xf32> to vector<2x8x1xf32>
    %34 = arith.addf %31, %33 : vector<2x8x1xf32>
    %c0_25 = arith.constant 0 : index
    %c0_26 = arith.constant 0 : index
    %c0_27 = arith.constant 0 : index
    %35 = vector.load %arg15[%c0_25, %c0_26, %c0_27] : memref<2x8x1xf32, #tpu.memory_space<vmem>>, vector<2x8x1xf32>
    tpu.vector_store %arg15[%c0_25, %c0_26, %c0_27], %34 {strides = array<i32>} : memref<2x8x1xf32, #tpu.memory_space<vmem>>, vector<2x8x1xf32>,
    %cst_28 = arith.constant dense<0.000000e+00> : vector<2x8x128xf32>
    %36 = tpu.matmul %29, %18, %cst_28 {dimension_numbers = #tpu.dot_dimension_numbers<[2], [1], [1], [2], [0, 0, 0, 1, 1, 2], [0], [0]>} : vector<2x8x8xf32>, vector<2x8x128xf32>, vector<2x8x128xf32> -> vector<2x8x128xf32>
    %c0_29 = arith.constant 0 : index
    %c0_30 = arith.constant 0 : index
    %c0_31 = arith.constant 0 : index
    %37 = vector.load %arg13[%c0_29, %c0_30, %c0_31] : memref<2x8x128xf32, #tpu.memory_space<vmem>>, vector<2x8x128xf32>
    %38 = vector.broadcast %26 : vector<2x8x1xf32> to vector<2x8x128xf32>
    %39 = arith.mulf %38, %37 : vector<2x8x128xf32>
    %40 = arith.addf %39, %36 : vector<2x8x128xf32>
    %c0_32 = arith.constant 0 : index
    %c0_33 = arith.constant 0 : index
    %c0_34 = arith.constant 0 : index
    %41 = vector.load %arg13[%c0_32, %c0_33, %c0_34] : memref<2x8x128xf32, #tpu.memory_space<vmem>>, vector<2x8x128xf32>
    tpu.vector_store %arg13[%c0_32, %c0_33, %c0_34], %40 {strides = array<i32>} : memref<2x8x128xf32, #tpu.memory_space<vmem>>, vector<2x8x128xf32>,
    %c0_35 = arith.constant 0 : index
    %c0_36 = arith.constant 0 : index
    %c0_37 = arith.constant 0 : index
    %42 = vector.load %arg14[%c0_35, %c0_36, %c0_37] : memref<2x8x1xf32, #tpu.memory_space<vmem>>, vector<2x8x1xf32>
    tpu.vector_store %arg14[%c0_35, %c0_36, %c0_37], %24 {strides = array<i32>} : memref<2x8x1xf32, #tpu.memory_space<vmem>>, vector<2x8x1xf32>,
    %c0_i32_38 = arith.constant 0 : i32
    %43 = arith.cmpi eq, %arg1, %c0_i32_38 : i32
    %44 = arith.extui %43 : i1 to i32
    %c0_i32_39 = arith.constant 0 : i32
    %45 = arith.cmpi ne, %44, %c0_i32_39 : i32
    scf.if %45 {
      %c0_40 = arith.constant 0 : index
      %c0_41 = arith.constant 0 : index
      %c0_42 = arith.constant 0 : index
      %46 = vector.load %arg15[%c0_40, %c0_41, %c0_42] : memref<2x8x1xf32, #tpu.memory_space<vmem>>, vector<2x8x1xf32>
      %47 = tpu.reciprocal %46 {approx = true} : vector<2x8x1xf32> -> vector<2x8x1xf32>
      %c0_43 = arith.constant 0 : index
      %c0_44 = arith.constant 0 : index
      %c0_45 = arith.constant 0 : index
      %48 = vector.load %arg13[%c0_43, %c0_44, %c0_45] : memref<2x8x128xf32, #tpu.memory_space<vmem>>, vector<2x8x128xf32>
      %49 = vector.broadcast %47 : vector<2x8x1xf32> to vector<2x8x128xf32>
      %50 = arith.mulf %48, %49 : vector<2x8x128xf32>
      %51 = vector.shape_cast %50 : vector<2x8x128xf32> to vector<16x128xf32>
      %c0_46 = arith.constant 0 : index
      %c0_47 = arith.constant 0 : index
      %52 = vector.load %arg8[%c0_46, %c0_47] : memref<128x128xf32, #tpu.memory_space<vmem>>, vector<128x128xf32>
      %cst_48 = arith.constant dense<0.000000e+00> : vector<16x128xf32>
      %53 = tpu.matmul %51, %52, %cst_48 {dimension_numbers = #tpu.dot_dimension_numbers<[1], [0], [0], [1], [0, 0, 1, 1], [], []>} : vector<16x128xf32>, vector<128x128xf32>, vector<16x128xf32> -> vector<16x128xf32>
      %c2 = arith.constant 2 : index
      %c0_49 = arith.constant 0 : index
      %54 = vector.load %arg9[%c2, %c0_49] : memref<8x256xf32, #tpu.memory_space<vmem>>, vector<1x128xf32>
      %55 = vector.broadcast %54 : vector<1x128xf32> to vector<16x128xf32>
      %56 = arith.addf %53, %55 : vector<16x128xf32>
      %c0_50 = arith.constant 0 : index
      %c0_51 = arith.constant 0 : index
      %57 = vector.load %arg12[%c0_50, %c0_51] : memref<16x128xf32, #tpu.memory_space<vmem>>, vector<16x128xf32>
      %58 = arith.addf %56, %57 : vector<16x128xf32>
      %59 = vector.shape_cast %58 : vector<16x128xf32> to vector<2x8x128xf32>
      %c0_52 = arith.constant 0 : index
      %c0_53 = arith.constant 0 : index
      %c0_54 = arith.constant 0 : index
      %60 = vector.load %arg10[%c0_52, %c0_53, %c0_54] : memref<2x8x128xf32, #tpu.memory_space<vmem>>, vector<2x8x128xf32>
      tpu.vector_store %arg10[%c0_52, %c0_53, %c0_54], %59 {strides = array<i32>} : memref<2x8x128xf32, #tpu.memory_space<vmem>>, vector<2x8x128xf32>,
    } else {
    }
    return
  }
  func.func @transform_0(%arg0: i32, %arg1: i32) -> (i32, i32, i32) {
    %c0_i32 = arith.constant 0 : i32
    %c0_i32_0 = arith.constant 0 : i32
    %c0_i32_1 = arith.constant 0 : i32
    return %arg0, %c0_i32, %c0_i32_0 : i32, i32, i32
  }
  func.func @transform_1(%arg0: i32, %arg1: i32) -> (i32, i32, i32) {
    %c0_i32 = arith.constant 0 : i32
    %c0_i32_0 = arith.constant 0 : i32
    return %arg0, %arg1, %c0_i32 : i32, i32, i32
  }
  func.func @transform_2(%arg0: i32, %arg1: i32) -> (i32, i32, i32) {
    %c0_i32 = arith.constant 0 : i32
    %c0_i32_0 = arith.constant 0 : i32
    return %arg0, %arg1, %c0_i32 : i32, i32, i32
  }
  func.func @transform_3(%arg0: i32, %arg1: i32) -> (i32, i32) {
    %c0_i32 = arith.constant 0 : i32
    %c0_i32_0 = arith.constant 0 : i32
    %c0_i32_1 = arith.constant 0 : i32
    return %c0_i32, %c0_i32_0 : i32, i32
  }
  func.func @transform_4(%arg0: i32, %arg1: i32) -> (i32, i32) {
    %c0_i32 = arith.constant 0 : i32
    %c0_i32_0 = arith.constant 0 : i32
    %c0_i32_1 = arith.constant 0 : i32
    return %c0_i32, %c0_i32_0 : i32, i32
  }
  func.func @transform_5(%arg0: i32, %arg1: i32) -> (i32, i32) {
    %c0_i32 = arith.constant 0 : i32
    %c0_i32_0 = arith.constant 0 : i32
    %c0_i32_1 = arith.constant 0 : i32
    return %c0_i32, %c0_i32_0 : i32, i32
  }
  func.func @transform_6(%arg0: i32, %arg1: i32) -> (i32, i32) {
    %c0_i32 = arith.constant 0 : i32
    %c0_i32_0 = arith.constant 0 : i32
    %c0_i32_1 = arith.constant 0 : i32
    return %c0_i32, %c0_i32_0 : i32, i32
  }
  func.func @transform_7(%arg0: i32, %arg1: i32) -> (i32, i32) {
    %c0_i32 = arith.constant 0 : i32
    %c0_i32_0 = arith.constant 0 : i32
    %c0_i32_1 = arith.constant 0 : i32
    return %c0_i32, %c0_i32_0 : i32, i32
  }
  func.func @transform_8(%arg0: i32, %arg1: i32) -> (i32, i32, i32) {
    %c0_i32 = arith.constant 0 : i32
    %c0_i32_0 = arith.constant 0 : i32
    %c0_i32_1 = arith.constant 0 : i32
    return %arg0, %c0_i32, %c0_i32_0 : i32, i32, i32
  }
}

</mosaic_0001>

<llo_original>
// kernel: tpu_custom_call.1
$region0: #{tpu_custom_call.1}
  #allocation0 [shape = 'u32[]', space=smem, size = 0x4, offset = 0x4, fixed_abs, tag = 'smem constant byte address 0x4 - core index']
  #allocation1 [shape = 'u32[144,128]{1,0:T(1,128)}', space=vmem, size = 0x12000, scoped, tag = 'internal scratch']
  #allocation2 [shape = 'f32[2,8,128]{2,1,0:T(8,128)}', space=vmem, size = 0x2000, scoped, tag = 'scratch operand']
  #allocation3 [shape = 'f32[16,128]{1,0:T(8,128)}', space=vmem, size = 0x2000, scoped, tag = 'scratch operand']
  #allocation4 [shape = 'f32[2,8,128]{2,1,0:T(8,128)}', space=vmem, size = 0x2000, scoped, tag = 'scratch operand']
  #allocation5 [shape = 'f32[2,8,1]{2,1,0:T(8,128)}', space=vmem, size = 0x2000, scoped, tag = 'scratch operand']
  #allocation6 [shape = 'f32[2,8,1]{2,1,0:T(8,128)}', space=vmem, size = 0x2000, scoped, tag = 'scratch operand']
  %s0 = inlined_call_operand.hbm [shape: f32[2,8,32], index: 0, kind: input, shape index: {}]
  %s1 = inlined_call_operand.hbm [shape: f32[2,8,16], index: 1, kind: input, shape index: {}]
  %s2 = inlined_call_operand.hbm [shape: f32[2,8,16], index: 2, kind: input, shape index: {}]
  %s3 = inlined_call_operand.hbm [shape: f32[32,256], index: 3, kind: input, shape index: {}]
  %s4 = inlined_call_operand.hbm [shape: f32[16,128], index: 4, kind: input, shape index: {}]
  %s5 = inlined_call_operand.vmem [shape: f32[16,128], index: 5, kind: input, shape index: {}]
  %s6 = inlined_call_operand.hbm [shape: f32[128,128], index: 6, kind: input, shape index: {}]
  %s7 = inlined_call_operand.hbm [shape: f32[8,256], index: 7, kind: input, shape index: {}]
  %s8 = inlined_call_operand.hbm [shape: f32[2,8,128], index: 8, kind: output, shape index: {}]
  %s9 = sld [smem:[#allocation0]]
  $region78: #{tpu_custom_call.1} parent=0
    _
  %s11 = ssub.s32 1, %s9
  %s12 = scalar_select 0, %s11, %s9
  $region1: #{tpu_custom_call.1} parent=0
    #allocation7 [shape = 'u8[8192]{0}', space=vmem, size = 0x2000, scoped, tag = 'input window, operand 0, single buffered']
    #allocation8 [shape = 's32[1]{0}', space=sflag, size = 0x4, scoped, tag = 'scoped memory for tpu_custom_call.1']
    #allocation9 [shape = 's32[1]{0}', space=sflag, size = 0x4, scoped, tag = 'scoped memory for tpu_custom_call.1']
    #allocation10 [shape = 'u8[8192]{0}', space=vmem, size = 0x2000, scoped, tag = 'input window, operand 1, single buffered']
    #allocation11 [shape = 's32[1]{0}', space=sflag, size = 0x4, scoped, tag = 'scoped memory for tpu_custom_call.1']
    #allocation12 [shape = 'u8[8192]{0}', space=vmem, size = 0x2000, scoped, tag = 'input window, operand 2, single buffered']
    #allocation13 [shape = 'u8[32768]{0}', space=vmem, size = 0x8000, scoped, tag = 'input window, operand 3, single buffered']
    #allocation14 [shape = 's32[1]{0}', space=sflag, size = 0x4, scoped, tag = 'scoped memory for tpu_custom_call.1']
    #allocation15 [shape = 'u8[8192]{0}', space=vmem, size = 0x2000, scoped, tag = 'input window, operand 4, single buffered']
    #allocation16 [shape = 'u8[65536]{0}', space=vmem, size = 0x10000, scoped, tag = 'input window, operand 6, single buffered']
    #allocation17 [shape = 's32[1]{0}', space=sflag, size = 0x4, scoped, tag = 'scoped memory for tpu_custom_call.1']
    #allocation18 [shape = 'u8[8192]{0}', space=vmem, size = 0x2000, scoped, tag = 'input window, operand 7, single buffered']
    #allocation19 [shape = 'u8[8192]{0}', space=vmem, size = 0x2000, scoped, tag = 'output window, operand 0, single buffered']
    %13 = vsyncpa [#allocation8], 0
    %14 = vsyncpa [#allocation11], 0
    %15 = vsyncpa [#allocation14], 0
    %16 = vsyncpa [#allocation17], 0
    %17 = vsyncpa [#allocation9], 0
    // Predicated region
    $region2: #{tpu_custom_call.1} parent=1 // pred_check
      _
    $region3: #{tpu_custom_call.1} parent=1 // pred_check_branch
      %19 = sbr.rel (0) target = $region5
    $region4: #{tpu_custom_call.1} parent=1 // pred_region
      %s21 = ssub.s32 256, 256
      %22 = vsyncadd [#allocation8], %s21
      %s23 = sshll.u32 [#allocation7], 4
      %s24 = int_to_ptr.vmem [resolvable:$true] %s23
      %29 = dma.hbm_to_vmem [thread:$0]  %s0, 256, %s24, [#allocation8], 128, 128, 8
    $region5: #{tpu_custom_call.1} parent=1 // pred_fallthru
      _
    // Predicated region
    $region6: #{tpu_custom_call.1} parent=1 // pred_check
      _
    $region7: #{tpu_custom_call.1} parent=1 // pred_check_branch
      %31 = sbr.rel (0) target = $region9
    $region8: #{tpu_custom_call.1} parent=1 // pred_region
      %s33 = ssub.s32 256, 256
      %34 = vsyncadd [#allocation11], %s33
      %s35 = sshll.u32 [#allocation10], 4
      %s36 = int_to_ptr.vmem [resolvable:$true] %s35
      %41 = dma.hbm_to_vmem [thread:$0]  %s1, 256, %s36, [#allocation11], 128, 128, 8
    $region9: #{tpu_custom_call.1} parent=1 // pred_fallthru
      _
    // Predicated region
    $region10: #{tpu_custom_call.1} parent=1 // pred_check
      _
    $region11: #{tpu_custom_call.1} parent=1 // pred_check_branch
      %43 = sbr.rel (0) target = $region13
    $region12: #{tpu_custom_call.1} parent=1 // pred_region
      %s45 = ssub.s32 256, 256
      %46 = vsyncadd [#allocation11], %s45
      %s47 = sshll.u32 [#allocation12], 4
      %s48 = int_to_ptr.vmem [resolvable:$true] %s47
      %53 = dma.hbm_to_vmem [thread:$0]  %s2, 256, %s48, [#allocation11], 128, 128, 8
    $region13: #{tpu_custom_call.1} parent=1 // pred_fallthru
      _
    // Predicated region
    $region14: #{tpu_custom_call.1} parent=1 // pred_check
      _
    $region15: #{tpu_custom_call.1} parent=1 // pred_check_branch
      %55 = sbr.rel (0) target = $region17
    $region16: #{tpu_custom_call.1} parent=1 // pred_region
      %s57 = ssub.s32 1024, 1024
      %58 = vsyncadd [#allocation14], %s57
      %s59 = sshll.u32 [#allocation13], 4
      %s60 = int_to_ptr.vmem [resolvable:$true] %s59
      %65 = dma.hbm_to_vmem [thread:$0]  %s3, 1024, %s60, [#allocation14], 256, 256, 16
    $region17: #{tpu_custom_call.1} parent=1 // pred_fallthru
      _
    // Predicated region
    $region18: #{tpu_custom_call.1} parent=1 // pred_check
      _
    $region19: #{tpu_custom_call.1} parent=1 // pred_check_branch
      %67 = sbr.rel (0) target = $region21
    $region20: #{tpu_custom_call.1} parent=1 // pred_region
      %s69 = ssub.s32 256, 256
      %70 = vsyncadd [#allocation14], %s69
      %s71 = sshll.u32 [#allocation15], 4
      %s72 = int_to_ptr.vmem [resolvable:$true] %s71
      %77 = dma.hbm_to_vmem [thread:$0]  %s4, 256, %s72, [#allocation14], 128, 128, 8
    $region21: #{tpu_custom_call.1} parent=1 // pred_fallthru
      _
    // Predicated region
    $region22: #{tpu_custom_call.1} parent=1 // pred_check
      _
    $region23: #{tpu_custom_call.1} parent=1 // pred_check_branch
      %79 = sbr.rel (0) target = $region25
    $region24: #{tpu_custom_call.1} parent=1 // pred_region
      _
    $region25: #{tpu_custom_call.1} parent=1 // pred_fallthru
      _
    // Predicated region
    $region26: #{tpu_custom_call.1} parent=1 // pred_check
      _
    $region27: #{tpu_custom_call.1} parent=1 // pred_check_branch
      %81 = sbr.rel (0) target = $region29
    $region28: #{tpu_custom_call.1} parent=1 // pred_region
      %s83 = ssub.s32 2048, 2048
      %84 = vsyncadd [#allocation17], %s83
      %s85 = sshll.u32 [#allocation16], 4
      %s86 = int_to_ptr.vmem [resolvable:$true] %s85
      %91 = dma.hbm_to_vmem [thread:$0]  %s6, 2048, %s86, [#allocation17], 128, 128, 8
    $region29: #{tpu_custom_call.1} parent=1 // pred_fallthru
      _
    // Predicated region
    $region30: #{tpu_custom_call.1} parent=1 // pred_check
      _
    $region31: #{tpu_custom_call.1} parent=1 // pred_check_branch
      %93 = sbr.rel (0) target = $region33
    $region32: #{tpu_custom_call.1} parent=1 // pred_region
      %s95 = ssub.s32 256, 256
      %96 = vsyncadd [#allocation17], %s95
      %s98 = sshll.u32 [#allocation18], 4
      %s99 = int_to_ptr.vmem [resolvable:$true] %s98
      %101 = dma.hbm_to_vmem [thread:$0]  %s7, 256, %s99, [#allocation17]
    $region33: #{tpu_custom_call.1} parent=1 // pred_fallthru
      _
    // Predicated region
    $region34: #{tpu_custom_call.1} parent=1 // pred_check
      _
    $region35: #{tpu_custom_call.1} parent=1 // pred_check_branch
      %103 = sbr.rel (0) target = $region37
    $region36: #{tpu_custom_call.1} parent=1 // pred_region
      %104 = dma.done [#allocation8], 256
    $region37: #{tpu_custom_call.1} parent=1 // pred_fallthru
      _
    // Predicated region
    $region38: #{tpu_custom_call.1} parent=1 // pred_check
      _
    $region39: #{tpu_custom_call.1} parent=1 // pred_check_branch
      %106 = sbr.rel (0) target = $region41
    $region40: #{tpu_custom_call.1} parent=1 // pred_region
      %107 = dma.done [#allocation11], 256
    $region41: #{tpu_custom_call.1} parent=1 // pred_fallthru
      _
    // Predicated region
    $region42: #{tpu_custom_call.1} parent=1 // pred_check
      _
    $region43: #{tpu_custom_call.1} parent=1 // pred_check_branch
      %109 = sbr.rel (0) target = $region45
    $region44: #{tpu_custom_call.1} parent=1 // pred_region
      %110 = dma.done [#allocation11], 256
    $region45: #{tpu_custom_call.1} parent=1 // pred_fallthru
      _
    // Predicated region
    $region46: #{tpu_custom_call.1} parent=1 // pred_check
      _
    $region47: #{tpu_custom_call.1} parent=1 // pred_check_branch
      %112 = sbr.rel (0) target = $region49
    $region48: #{tpu_custom_call.1} parent=1 // pred_region
      %113 = dma.done [#allocation14], 1024
    $region49: #{tpu_custom_call.1} parent=1 // pred_fallthru
      _
    // Predicated region
    $region50: #{tpu_custom_call.1} parent=1 // pred_check
      _
    $region51: #{tpu_custom_call.1} parent=1 // pred_check_branch
      %115 = sbr.rel (0) target = $region53
    $region52: #{tpu_custom_call.1} parent=1 // pred_region
      %116 = dma.done [#allocation14], 256
    $region53: #{tpu_custom_call.1} parent=1 // pred_fallthru
      _
    // Predicated region
    $region54: #{tpu_custom_call.1} parent=1 // pred_check
      _
    $region55: #{tpu_custom_call.1} parent=1 // pred_check_branch
      %118 = sbr.rel (0) target = $region57
    $region56: #{tpu_custom_call.1} parent=1 // pred_region
      %119 = dma.done [#allocation17], 2048
    $region57: #{tpu_custom_call.1} parent=1 // pred_fallthru
      _
    // Predicated region
    $region58: #{tpu_custom_call.1} parent=1 // pred_check
      _
    $region59: #{tpu_custom_call.1} parent=1 // pred_check_branch
      %121 = sbr.rel (0) target = $region61
    $region60: #{tpu_custom_call.1} parent=1 // pred_region
      %122 = dma.done [#allocation17], 256
    $region61: #{tpu_custom_call.1} parent=1 // pred_fallthru
      _
    %p123 = scmp.eq.s32.totalorder 0, 0
    // Predicated region
    $region62: #{tpu_custom_call.1} parent=1 // pred_check
      %p124 = pneg %p123
    $region63: #{tpu_custom_call.1} parent=1 // pred_check_branch
      %126 = sbr.rel (%p124) target = $region65
    $region64: #{tpu_custom_call.1} parent=1 // pred_region
      %v127 = vld [vmem:[#allocation7] sm:$0xff]
      %v128 = vld [vmem:[#allocation7 + $0x8] sm:$0xff]
      %v129 = vld [vmem:[#allocation13] sm:$0xff]
      %v130 = vld [vmem:[#allocation13 + $0x8] sm:$0xff]
      %v131 = vld [vmem:[#allocation13 + $0x10] sm:$0xff]
      %v132 = vld [vmem:[#allocation13 + $0x18] sm:$0xff]
      %v133 = vld [vmem:[#allocation13 + $0x20] sm:$0xff]
      %v134 = vld [vmem:[#allocation13 + $0x28] sm:$0xff]
      %v135 = vld [vmem:[#allocation13 + $0x30] sm:$0xff]
      %v136 = vld [vmem:[#allocation13 + $0x38] sm:$0xff]
      %v137 = vld [vmem:[#allocation18] ss:$8 sm:$0x3]
      %v139 = vlaneseq
      %v140 = vshrl.u32 %v139, 7
      %v141 = vsub.s32 0, %v140
      %v142 = vrot.slane %v137, %v141
      %v143 = vlaneseq
      %v144 = vshrl.u32 %v143, 7
      %v145 = vsub.s32 1, %v144
      %v146 = vrot.slane %v137, %v145
      %vm149 = vcmask 261120
      %v151 = vsel %vm149, %v127, 0
      %v154 = vsel %vm149, %v128, 0
      %156 = vmatprep.subr.mxu0 %v130
      %157 = vmatpush1.msra.mxu0 %v129
      %158 = vmatprep.subr.mxu0 %v132
      %159 = vmatpush1.msra.mxu0 %v131
      %160 = vmatprep.subr.mxu0 %v134
      %161 = vmatpush1.msra.mxu0 %v133
      %162 = vmatprep.subr.mxu0 %v136
      %163 = vmatpush1.msra.mxu0 %v135
      %164 = vmatprep.subr.mxu0 0.0
      %165 = vmatpush1.msra.mxu0 0.0
      %166 = vmatprep.subr.mxu0 0.0
      %167 = vmatpush1.msra.mxu0 0.0
      %168 = vmatprep.subr.mxu0 0.0
      %169 = vmatpush1.msra.mxu0 0.0
      %170 = vmatprep.subr.mxu0 0.0
      %171 = vmatpush1.msra.mxu0 0.0
      %172 = vmatprep.subr.mxu0 0.0
      %173 = vmatpush1.msra.mxu0 0.0
      %174 = vmatprep.subr.mxu0 0.0
      %175 = vmatpush1.msra.mxu0 0.0
      %176 = vmatprep.subr.mxu0 0.0
      %177 = vmatpush1.msra.mxu0 0.0
      %178 = vmatprep.subr.mxu0 0.0
      %179 = vmatpush1.msra.mxu0 0.0
      %180 = vmatprep.subr.mxu0 0.0
      %181 = vmatpush1.msra.mxu0 0.0
      %182 = vmatprep.subr.mxu0 0.0
      %183 = vmatpush1.msra.mxu0 0.0
      %184 = vmatprep.subr.mxu0 0.0
      %185 = vmatpush1.msra.mxu0 0.0
      %186 = vmatprep.subr.mxu0 0.0
      %187 = vmatpush1.msra.mxu0 0.0
      %188 = vmatprep.subr.mxu0 0.0
      %189 = vmatpush1.msra.mxu0 0.0
      %190 = vmatprep.subr.mxu0 0.0
      %191 = vmatpush1.msra.mxu0 0.0
      %192 = vmatprep.subr.mxu0 0.0
      %193 = vmatpush1.msra.mxu0 0.0
      %194 = vmatprep.subr.mxu0 0.0
      %195 = vmatpush1.msra.mxu0 0.0
      %196 = vmatprep.subr.mxu0 0.0
      %197 = vmatpush1.msra.mxu0 0.0
      %198 = vmatprep.subr.mxu0 0.0
      %199 = vmatpush1.msra.mxu0 0.0
      %200 = vmatprep.subr.mxu0 0.0
      %201 = vmatpush1.msra.mxu0 0.0
      %202 = vmatprep.subr.mxu0 0.0
      %203 = vmatpush1.msra.mxu0 0.0
      %204 = vmatprep.subr.mxu0 0.0
      %205 = vmatpush1.msra.mxu0 0.0
      %206 = vmatprep.subr.mxu0 0.0
      %207 = vmatpush1.msra.mxu0 0.0
      %208 = vmatprep.subr.mxu0 0.0
      %209 = vmatpush1.msra.mxu0 0.0
      %210 = vmatprep.subr.mxu0 0.0
      %211 = vmatpush1.msra.mxu0 0.0
      %212 = vmatprep.subr.mxu0 0.0
      %213 = vmatpush1.msra.mxu0 0.0
      %214 = vmatprep.subr.mxu0 0.0
      %215 = vmatpush1.msra.mxu0 0.0
      %216 = vmatprep.subr.mxu0 0.0
      %217 = vmatpush1.msra.mxu0 0.0
      %218 = vmatprep.subr.mxu0 0.0
      %219 = vmatpush1.msra.mxu0 0.0
      %220 = vmatprep.mubr.f32.mxu0 0.0
      %221 = vmatmul.mubr.f32.gmra.mrb[0].mxu0 %v151
      %v222 = vpop.f32.mrb[0].mxu0
      %v223 = vadd.f32 %v142, %v222
      %v224 = vpop.f32.mrb[0].mxu0
      %v225 = vadd.f32 %v146, %v224
      %226 = vmatprep.mubr.f32.mxu0 0.0
      %227 = vmatmul.mubr.f32.gmra.mrb[0].mxu0 %v154
      %v228 = vpop.f32.mrb[0].mxu0
      %v229 = vadd.f32 %v142, %v228
      %v230 = vpop.f32.mrb[0].mxu0
      %v231 = vadd.f32 %v146, %v230
      %232 = vdwg.mxu0
      %233 = vst [vmem:[#allocation2] sm:$0xff] %v223
      %234 = vst [vmem:[#allocation2 + $0x8] sm:$0xff] %v229
      %235 = vst [vmem:[#allocation3] sm:$0xff] %v225
      %236 = vst [vmem:[#allocation3 + $0x8] sm:$0xff] %v231
      %vm237 = vcmask 7168
      %238 = vst.msk [vmem:[#allocation5] sm:$0xff] %vm237, -inf
      %239 = vst.msk [vmem:[#allocation5 + $0x8] sm:$0xff] %vm237, -inf
      %240 = vst.msk [vmem:[#allocation6] sm:$0xff] %vm237, 0.0
      %241 = vst.msk [vmem:[#allocation6 + $0x8] sm:$0xff] %vm237, 0.0
      %242 = vst [vmem:[#allocation4] sm:$0xff] 0.0
      %243 = vst [vmem:[#allocation4 + $0x8] sm:$0xff] 0.0
    $region65: #{tpu_custom_call.1} parent=1 // pred_fallthru
      _
    %v244 = vld [vmem:[#allocation10] sm:$0xff]
    %v245 = vld [vmem:[#allocation10 + $0x8] sm:$0xff]
    %v246 = vld [vmem:[#allocation12] sm:$0xff]
    %v247 = vld [vmem:[#allocation12 + $0x8] sm:$0xff]
    %v248 = vld [vmem:[#allocation15] sm:$0xff]
    %v249 = vld [vmem:[#allocation15 + $0x8] sm:$0xff]
    %v250 = vld [vmem:[#allocation18 + $0x1] ss:$0 sm:$0xff]
    %vm251 = vcmask 130048
    %v253 = vsel %vm251, %v244, 0
    %v256 = vsel %vm251, %v245, 0
    %258 = vmatprep.subr.mxu0 0.0
    %259 = vmatpush1.msra.mxu0 %v248
    %260 = vmatprep.subr.mxu0 0.0
    %261 = vmatpush1.msra.mxu0 %v249
    %262 = vmatprep.subr.mxu0 0.0
    %263 = vmatpush1.msra.mxu0 0.0
    %264 = vmatprep.subr.mxu0 0.0
    %265 = vmatpush1.msra.mxu0 0.0
    %266 = vmatprep.subr.mxu0 0.0
    %267 = vmatpush1.msra.mxu0 0.0
    %268 = vmatprep.subr.mxu0 0.0
    %269 = vmatpush1.msra.mxu0 0.0
    %270 = vmatprep.subr.mxu0 0.0
    %271 = vmatpush1.msra.mxu0 0.0
    %272 = vmatprep.subr.mxu0 0.0
    %273 = vmatpush1.msra.mxu0 0.0
    %274 = vmatprep.subr.mxu0 0.0
    %275 = vmatpush1.msra.mxu0 0.0
    %276 = vmatprep.subr.mxu0 0.0
    %277 = vmatpush1.msra.mxu0 0.0
    %278 = vmatprep.subr.mxu0 0.0
    %279 = vmatpush1.msra.mxu0 0.0
    %280 = vmatprep.subr.mxu0 0.0
    %281 = vmatpush1.msra.mxu0 0.0
    %282 = vmatprep.subr.mxu0 0.0
    %283 = vmatpush1.msra.mxu0 0.0
    %284 = vmatprep.subr.mxu0 0.0
    %285 = vmatpush1.msra.mxu0 0.0
    %286 = vmatprep.subr.mxu0 0.0
    %287 = vmatpush1.msra.mxu0 0.0
    %288 = vmatprep.subr.mxu0 0.0
    %289 = vmatpush1.msra.mxu0 0.0
    %290 = vmatprep.subr.mxu0 0.0
    %291 = vmatpush1.msra.mxu0 0.0
    %292 = vmatprep.subr.mxu0 0.0
    %293 = vmatpush1.msra.mxu0 0.0
    %294 = vmatprep.subr.mxu0 0.0
    %295 = vmatpush1.msra.mxu0 0.0
    %296 = vmatprep.subr.mxu0 0.0
    %297 = vmatpush1.msra.mxu0 0.0
    %298 = vmatprep.subr.mxu0 0.0
    %299 = vmatpush1.msra.mxu0 0.0
    %300 = vmatprep.subr.mxu0 0.0
    %301 = vmatpush1.msra.mxu0 0.0
    %302 = vmatprep.subr.mxu0 0.0
    %303 = vmatpush1.msra.mxu0 0.0
    %304 = vmatprep.subr.mxu0 0.0
    %305 = vmatpush1.msra.mxu0 0.0
    %306 = vmatprep.subr.mxu0 0.0
    %307 = vmatpush1.msra.mxu0 0.0
    %308 = vmatprep.subr.mxu0 0.0
    %309 = vmatpush1.msra.mxu0 0.0
    %310 = vmatprep.subr.mxu0 0.0
    %311 = vmatpush1.msra.mxu0 0.0
    %312 = vmatprep.subr.mxu0 0.0
    %313 = vmatpush1.msra.mxu0 0.0
    %314 = vmatprep.subr.mxu0 0.0
    %315 = vmatpush1.msra.mxu0 0.0
    %316 = vmatprep.subr.mxu0 0.0
    %317 = vmatpush1.msra.mxu0 0.0
    %318 = vmatprep.subr.mxu0 0.0
    %319 = vmatpush1.msra.mxu0 0.0
    %320 = vmatprep.subr.mxu0 0.0
    %321 = vmatpush1.msra.mxu0 0.0
    %322 = vmatprep.mubr.f32.mxu0 0.0
    %323 = vmatmul.mubr.f32.gmra.mrb[0].mxu0 %v253
    %v324 = vpop.f32.mrb[0].mxu0
    %v325 = vadd.f32 %v250, %v324
    %v326 = vpop.f32.mrb[0].mxu0
    %327 = vmatprep.mubr.f32.mxu0 0.0
    %328 = vmatmul.mubr.f32.gmra.mrb[0].mxu0 %v256
    %v329 = vpop.f32.mrb[0].mxu0
    %v330 = vadd.f32 %v250, %v329
    %v331 = vpop.f32.mrb[0].mxu0
    %332 = vdwg.mxu0
    %v333 = vld [vmem:[%s5] sm:$0xff]
    %v334 = vld [vmem:[%s5 + $0x8] sm:$0xff]
    %v335 = vld [vmem:[#allocation18 + $0x9] ss:$0 sm:$0xff]
    %v337 = vsel %vm251, %v246, 0
    %v340 = vsel %vm251, %v247, 0
    %342 = vmatprep.subr.mxu0 0.0
    %343 = vmatpush1.msra.mxu0 %v333
    %344 = vmatprep.subr.mxu0 0.0
    %345 = vmatpush1.msra.mxu0 %v334
    %346 = vmatprep.subr.mxu0 0.0
    %347 = vmatpush1.msra.mxu0 0.0
    %348 = vmatprep.subr.mxu0 0.0
    %349 = vmatpush1.msra.mxu0 0.0
    %350 = vmatprep.subr.mxu0 0.0
    %351 = vmatpush1.msra.mxu0 0.0
    %352 = vmatprep.subr.mxu0 0.0
    %353 = vmatpush1.msra.mxu0 0.0
    %354 = vmatprep.subr.mxu0 0.0
    %355 = vmatpush1.msra.mxu0 0.0
    %356 = vmatprep.subr.mxu0 0.0
    %357 = vmatpush1.msra.mxu0 0.0
    %358 = vmatprep.subr.mxu0 0.0
    %359 = vmatpush1.msra.mxu0 0.0
    %360 = vmatprep.subr.mxu0 0.0
    %361 = vmatpush1.msra.mxu0 0.0
    %362 = vmatprep.subr.mxu0 0.0
    %363 = vmatpush1.msra.mxu0 0.0
    %364 = vmatprep.subr.mxu0 0.0
    %365 = vmatpush1.msra.mxu0 0.0
    %366 = vmatprep.subr.mxu0 0.0
    %367 = vmatpush1.msra.mxu0 0.0
    %368 = vmatprep.subr.mxu0 0.0
    %369 = vmatpush1.msra.mxu0 0.0
    %370 = vmatprep.subr.mxu0 0.0
    %371 = vmatpush1.msra.mxu0 0.0
    %372 = vmatprep.subr.mxu0 0.0
    %373 = vmatpush1.msra.mxu0 0.0
    %374 = vmatprep.subr.mxu0 0.0
    %375 = vmatpush1.msra.mxu0 0.0
    %376 = vmatprep.subr.mxu0 0.0
    %377 = vmatpush1.msra.mxu0 0.0
    %378 = vmatprep.subr.mxu0 0.0
    %379 = vmatpush1.msra.mxu0 0.0
    %380 = vmatprep.subr.mxu0 0.0
    %381 = vmatpush1.msra.mxu0 0.0
    %382 = vmatprep.subr.mxu0 0.0
    %383 = vmatpush1.msra.mxu0 0.0
    %384 = vmatprep.subr.mxu0 0.0
    %385 = vmatpush1.msra.mxu0 0.0
    %386 = vmatprep.subr.mxu0 0.0
    %387 = vmatpush1.msra.mxu0 0.0
    %388 = vmatprep.subr.mxu0 0.0
    %389 = vmatpush1.msra.mxu0 0.0
    %390 = vmatprep.subr.mxu0 0.0
    %391 = vmatpush1.msra.mxu0 0.0
    %392 = vmatprep.subr.mxu0 0.0
    %393 = vmatpush1.msra.mxu0 0.0
    %394 = vmatprep.subr.mxu0 0.0
    %395 = vmatpush1.msra.mxu0 0.0
    %396 = vmatprep.subr.mxu0 0.0
    %397 = vmatpush1.msra.mxu0 0.0
    %398 = vmatprep.subr.mxu0 0.0
    %399 = vmatpush1.msra.mxu0 0.0
    %400 = vmatprep.subr.mxu0 0.0
    %401 = vmatpush1.msra.mxu0 0.0
    %402 = vmatprep.subr.mxu0 0.0
    %403 = vmatpush1.msra.mxu0 0.0
    %404 = vmatprep.subr.mxu0 0.0
    %405 = vmatpush1.msra.mxu0 0.0
    %406 = vmatprep.mubr.f32.mxu0 0.0
    %407 = vmatmul.mubr.f32.gmra.mrb[0].mxu0 %v337
    %v408 = vpop.f32.mrb[0].mxu0
    %v409 = vadd.f32 %v335, %v408
    %v410 = vpop.f32.mrb[0].mxu0
    %411 = vmatprep.mubr.f32.mxu0 0.0
    %412 = vmatmul.mubr.f32.gmra.mrb[0].mxu0 %v340
    %v413 = vpop.f32.mrb[0].mxu0
    %v414 = vadd.f32 %v335, %v413
    %v415 = vpop.f32.mrb[0].mxu0
    %416 = vdwg.mxu0
    %v417 = vld [vmem:[#allocation2] sm:$0xff]
    %v418 = vld [vmem:[#allocation2 + $0x8] sm:$0xff]
    %419 = vmatprep.subr.mxu0 0.0
    %420 = vmatpush1.xpose.msra.mxu0 %v325
    %421 = vmatprep.subr.mxu0 0.0
    %422 = vmatpush1.xpose.msra.mxu0 0.0
    %423 = vmatprep.subr.mxu0 0.0
    %424 = vmatpush1.xpose.msra.mxu0 0.0
    %425 = vmatprep.subr.mxu0 0.0
    %426 = vmatpush1.xpose.msra.mxu0 0.0
    %427 = vmatprep.subr.mxu0 0.0
    %428 = vmatpush1.xpose.msra.mxu0 0.0
    %429 = vmatprep.subr.mxu0 0.0
    %430 = vmatpush1.xpose.msra.mxu0 0.0
    %431 = vmatprep.subr.mxu0 0.0
    %432 = vmatpush1.xpose.msra.mxu0 0.0
    %433 = vmatprep.subr.mxu0 0.0
    %434 = vmatpush1.xpose.msra.mxu0 0.0
    %435 = vmatprep.subr.mxu0 0.0
    %436 = vmatpush1.xpose.msra.mxu0 0.0
    %437 = vmatprep.subr.mxu0 0.0
    %438 = vmatpush1.xpose.msra.mxu0 0.0
    %439 = vmatprep.subr.mxu0 0.0
    %440 = vmatpush1.xpose.msra.mxu0 0.0
    %441 = vmatprep.subr.mxu0 0.0
    %442 = vmatpush1.xpose.msra.mxu0 0.0
    %443 = vmatprep.subr.mxu0 0.0
    %444 = vmatpush1.xpose.msra.mxu0 0.0
    %445 = vmatprep.subr.mxu0 0.0
    %446 = vmatpush1.xpose.msra.mxu0 0.0
    %447 = vmatprep.subr.mxu0 0.0
    %448 = vmatpush1.xpose.msra.mxu0 0.0
    %449 = vmatprep.subr.mxu0 0.0
    %450 = vmatpush1.xpose.msra.mxu0 0.0
    %451 = vmatprep.subr.mxu0 0.0
    %452 = vmatpush1.xpose.msra.mxu0 0.0
    %453 = vmatprep.subr.mxu0 0.0
    %454 = vmatpush1.xpose.msra.mxu0 0.0
    %455 = vmatprep.subr.mxu0 0.0
    %456 = vmatpush1.xpose.msra.mxu0 0.0
    %457 = vmatprep.subr.mxu0 0.0
    %458 = vmatpush1.xpose.msra.mxu0 0.0
    %459 = vmatprep.subr.mxu0 0.0
    %460 = vmatpush1.xpose.msra.mxu0 0.0
    %461 = vmatprep.subr.mxu0 0.0
    %462 = vmatpush1.xpose.msra.mxu0 0.0
    %463 = vmatprep.subr.mxu0 0.0
    %464 = vmatpush1.xpose.msra.mxu0 0.0
    %465 = vmatprep.subr.mxu0 0.0
    %466 = vmatpush1.xpose.msra.mxu0 0.0
    %467 = vmatprep.subr.mxu0 0.0
    %468 = vmatpush1.xpose.msra.mxu0 0.0
    %469 = vmatprep.subr.mxu0 0.0
    %470 = vmatpush1.xpose.msra.mxu0 0.0
    %471 = vmatprep.subr.mxu0 0.0
    %472 = vmatpush1.xpose.msra.mxu0 0.0
    %473 = vmatprep.subr.mxu0 0.0
    %474 = vmatpush1.xpose.msra.mxu0 0.0
    %475 = vmatprep.subr.mxu0 0.0
    %476 = vmatpush1.xpose.msra.mxu0 0.0
    %477 = vmatprep.subr.mxu0 0.0
    %478 = vmatpush1.xpose.msra.mxu0 0.0
    %479 = vmatprep.subr.mxu0 0.0
    %480 = vmatpush1.xpose.msra.mxu0 0.0
    %481 = vmatprep.subr.mxu0 0.0
    %482 = vmatpush1.xpose.msra.mxu0 0.0
    %483 = vmatprep.mubr.f32.mxu0 0.0
    %484 = vmatmul.mubr.f32.gmra.mrb[0].mxu0 %v417
    %v485 = vpop.f32.mrb[0].mxu0
    %v486 = vadd.f32 0.0, %v485
    %v487 = vpop.f32.mrb[0].mxu0
    %488 = vdwg.mxu0
    %489 = vmatprep.subr.mxu0 0.0
    %490 = vmatpush1.xpose.msra.mxu0 %v330
    %491 = vmatprep.subr.mxu0 0.0
    %492 = vmatpush1.xpose.msra.mxu0 0.0
    %493 = vmatprep.subr.mxu0 0.0
    %494 = vmatpush1.xpose.msra.mxu0 0.0
    %495 = vmatprep.subr.mxu0 0.0
    %496 = vmatpush1.xpose.msra.mxu0 0.0
    %497 = vmatprep.subr.mxu0 0.0
    %498 = vmatpush1.xpose.msra.mxu0 0.0
    %499 = vmatprep.subr.mxu0 0.0
    %500 = vmatpush1.xpose.msra.mxu0 0.0
    %501 = vmatprep.subr.mxu0 0.0
    %502 = vmatpush1.xpose.msra.mxu0 0.0
    %503 = vmatprep.subr.mxu0 0.0
    %504 = vmatpush1.xpose.msra.mxu0 0.0
    %505 = vmatprep.subr.mxu0 0.0
    %506 = vmatpush1.xpose.msra.mxu0 0.0
    %507 = vmatprep.subr.mxu0 0.0
    %508 = vmatpush1.xpose.msra.mxu0 0.0
    %509 = vmatprep.subr.mxu0 0.0
    %510 = vmatpush1.xpose.msra.mxu0 0.0
    %511 = vmatprep.subr.mxu0 0.0
    %512 = vmatpush1.xpose.msra.mxu0 0.0
    %513 = vmatprep.subr.mxu0 0.0
    %514 = vmatpush1.xpose.msra.mxu0 0.0
    %515 = vmatprep.subr.mxu0 0.0
    %516 = vmatpush1.xpose.msra.mxu0 0.0
    %517 = vmatprep.subr.mxu0 0.0
    %518 = vmatpush1.xpose.msra.mxu0 0.0
    %519 = vmatprep.subr.mxu0 0.0
    %520 = vmatpush1.xpose.msra.mxu0 0.0
    %521 = vmatprep.subr.mxu0 0.0
    %522 = vmatpush1.xpose.msra.mxu0 0.0
    %523 = vmatprep.subr.mxu0 0.0
    %524 = vmatpush1.xpose.msra.mxu0 0.0
    %525 = vmatprep.subr.mxu0 0.0
    %526 = vmatpush1.xpose.msra.mxu0 0.0
    %527 = vmatprep.subr.mxu0 0.0
    %528 = vmatpush1.xpose.msra.mxu0 0.0
    %529 = vmatprep.subr.mxu0 0.0
    %530 = vmatpush1.xpose.msra.mxu0 0.0
    %531 = vmatprep.subr.mxu0 0.0
    %532 = vmatpush1.xpose.msra.mxu0 0.0
    %533 = vmatprep.subr.mxu0 0.0
    %534 = vmatpush1.xpose.msra.mxu0 0.0
    %535 = vmatprep.subr.mxu0 0.0
    %536 = vmatpush1.xpose.msra.mxu0 0.0
    %537 = vmatprep.subr.mxu0 0.0
    %538 = vmatpush1.xpose.msra.mxu0 0.0
    %539 = vmatprep.subr.mxu0 0.0
    %540 = vmatpush1.xpose.msra.mxu0 0.0
    %541 = vmatprep.subr.mxu0 0.0
    %542 = vmatpush1.xpose.msra.mxu0 0.0
    %543 = vmatprep.subr.mxu0 0.0
    %544 = vmatpush1.xpose.msra.mxu0 0.0
    %545 = vmatprep.subr.mxu0 0.0
    %546 = vmatpush1.xpose.msra.mxu0 0.0
    %547 = vmatprep.subr.mxu0 0.0
    %548 = vmatpush1.xpose.msra.mxu0 0.0
    %549 = vmatprep.subr.mxu0 0.0
    %550 = vmatpush1.xpose.msra.mxu0 0.0
    %551 = vmatprep.subr.mxu0 0.0
    %552 = vmatpush1.xpose.msra.mxu0 0.0
    %553 = vmatprep.mubr.f32.mxu0 0.0
    %554 = vmatmul.mubr.f32.gmra.mrb[0].mxu0 %v418
    %v555 = vpop.f32.mrb[0].mxu0
    %v556 = vadd.f32 0.0, %v555
    %v557 = vpop.f32.mrb[0].mxu0
    %558 = vdwg.mxu0
    %v559 = vld [vmem:[#allocation5] sm:$0xff]
    %v560 = vld [vmem:[#allocation5 + $0x8] sm:$0xff]
    %vm561 = vcmask 64512
    %v562 = vsel %vm561, %v486, -inf
    %563 = vmax.xlane.f32.xlu0 %v562
    %v564 = vpop.xlane.xlu0 %563
    %v565 = vsel %vm561, %v556, -inf
    %566 = vmax.xlane.f32.xlu0 %v565
    %v567 = vpop.xlane.xlu0 %566
    %v568 = vmax.f32 %v559, %v564
    %v569 = vmax.f32 %v560, %v567
    %v570 = vsub.f32 %v559, %v568
    %v571 = vsub.f32 %v560, %v569
    %v572 = vmul.f32 %v570, 1.442695
    %v573 = vpow.pop %v572
    %v574 = vmul.f32 %v571, 1.442695
    %v575 = vpow.pop %v574
    %577 = vset.pattern.permute.xlu0 0
    %578 = vperm.xlu0 %577, %v568
    %v579 = vpop.permute.xlu0 %578
    %582 = vset.pattern.permute.xlu0 0
    %583 = vperm.xlu0 %582, %v569
    %v584 = vpop.permute.xlu0 %583
    %v586 = vsub.f32 %v486, %v579
    %v587 = vsub.f32 %v556, %v584
    %v588 = vmul.f32 %v586, 1.442695
    %v589 = vpow.pop %v588
    %v590 = vmul.f32 %v587, 1.442695
    %v591 = vpow.pop %v590
    %v592 = vld [vmem:[#allocation6] sm:$0xff]
    %v593 = vld [vmem:[#allocation6 + $0x8] sm:$0xff]
    %v594 = vmul.f32 %v573, %v592
    %v595 = vmul.f32 %v575, %v593
    %v596 = vsel %vm561, %v589, 0.0
    %597 = vadd.xlane.f32.xlu0 %v596
    %v598 = vpop.xlane.xlu0 %597
    %v599 = vsel %vm561, %v591, 0.0
    %600 = vadd.xlane.f32.xlu0 %v599
    %v601 = vpop.xlane.xlu0 %600
    %v602 = vadd.f32 %v594, %v598
    %v603 = vadd.f32 %v595, %v601
    %vm604 = vcmask 7168
    %605 = vst.msk [vmem:[#allocation6] sm:$0xff] %vm604, %v602
    %606 = vst.msk [vmem:[#allocation6 + $0x8] sm:$0xff] %vm604, %v603
    %v608 = vsel %vm561, %v589, 0
    %610 = vmatprep.subr.mxu0 0.0
    %611 = vmatpush1.msra.mxu0 %v409
    %612 = vmatprep.subr.mxu0 0.0
    %613 = vmatpush1.msra.mxu0 0.0
    %614 = vmatprep.subr.mxu0 0.0
    %615 = vmatpush1.msra.mxu0 0.0
    %616 = vmatprep.subr.mxu0 0.0
    %617 = vmatpush1.msra.mxu0 0.0
    %618 = vmatprep.subr.mxu0 0.0
    %619 = vmatpush1.msra.mxu0 0.0
    %620 = vmatprep.subr.mxu0 0.0
    %621 = vmatpush1.msra.mxu0 0.0
    %622 = vmatprep.subr.mxu0 0.0
    %623 = vmatpush1.msra.mxu0 0.0
    %624 = vmatprep.subr.mxu0 0.0
    %625 = vmatpush1.msra.mxu0 0.0
    %626 = vmatprep.subr.mxu0 0.0
    %627 = vmatpush1.msra.mxu0 0.0
    %628 = vmatprep.subr.mxu0 0.0
    %629 = vmatpush1.msra.mxu0 0.0
    %630 = vmatprep.subr.mxu0 0.0
    %631 = vmatpush1.msra.mxu0 0.0
    %632 = vmatprep.subr.mxu0 0.0
    %633 = vmatpush1.msra.mxu0 0.0
    %634 = vmatprep.subr.mxu0 0.0
    %635 = vmatpush1.msra.mxu0 0.0
    %636 = vmatprep.subr.mxu0 0.0
    %637 = vmatpush1.msra.mxu0 0.0
    %638 = vmatprep.subr.mxu0 0.0
    %639 = vmatpush1.msra.mxu0 0.0
    %640 = vmatprep.subr.mxu0 0.0
    %641 = vmatpush1.msra.mxu0 0.0
    %642 = vmatprep.subr.mxu0 0.0
    %643 = vmatpush1.msra.mxu0 0.0
    %644 = vmatprep.subr.mxu0 0.0
    %645 = vmatpush1.msra.mxu0 0.0
    %646 = vmatprep.subr.mxu0 0.0
    %647 = vmatpush1.msra.mxu0 0.0
    %648 = vmatprep.subr.mxu0 0.0
    %649 = vmatpush1.msra.mxu0 0.0
    %650 = vmatprep.subr.mxu0 0.0
    %651 = vmatpush1.msra.mxu0 0.0
    %652 = vmatprep.subr.mxu0 0.0
    %653 = vmatpush1.msra.mxu0 0.0
    %654 = vmatprep.subr.mxu0 0.0
    %655 = vmatpush1.msra.mxu0 0.0
    %656 = vmatprep.subr.mxu0 0.0
    %657 = vmatpush1.msra.mxu0 0.0
    %658 = vmatprep.subr.mxu0 0.0
    %659 = vmatpush1.msra.mxu0 0.0
    %660 = vmatprep.subr.mxu0 0.0
    %661 = vmatpush1.msra.mxu0 0.0
    %662 = vmatprep.subr.mxu0 0.0
    %663 = vmatpush1.msra.mxu0 0.0
    %664 = vmatprep.subr.mxu0 0.0
    %665 = vmatpush1.msra.mxu0 0.0
    %666 = vmatprep.subr.mxu0 0.0
    %667 = vmatpush1.msra.mxu0 0.0
    %668 = vmatprep.subr.mxu0 0.0
    %669 = vmatpush1.msra.mxu0 0.0
    %670 = vmatprep.subr.mxu0 0.0
    %671 = vmatpush1.msra.mxu0 0.0
    %672 = vmatprep.subr.mxu0 0.0
    %673 = vmatpush1.msra.mxu0 0.0
    %674 = vmatprep.mubr.f32.mxu0 0.0
    %675 = vmatmul.mubr.f32.gmra.mrb[0].mxu0 %v608
    %v676 = vpop.f32.mrb[0].mxu0
    %v677 = vadd.f32 0.0, %v676
    %v678 = vpop.f32.mrb[0].mxu0
    %679 = vdwg.mxu0
    %v681 = vsel %vm561, %v591, 0
    %683 = vmatprep.subr.mxu0 0.0
    %684 = vmatpush1.msra.mxu0 %v414
    %685 = vmatprep.subr.mxu0 0.0
    %686 = vmatpush1.msra.mxu0 0.0
    %687 = vmatprep.subr.mxu0 0.0
    %688 = vmatpush1.msra.mxu0 0.0
    %689 = vmatprep.subr.mxu0 0.0
    %690 = vmatpush1.msra.mxu0 0.0
    %691 = vmatprep.subr.mxu0 0.0
    %692 = vmatpush1.msra.mxu0 0.0
    %693 = vmatprep.subr.mxu0 0.0
    %694 = vmatpush1.msra.mxu0 0.0
    %695 = vmatprep.subr.mxu0 0.0
    %696 = vmatpush1.msra.mxu0 0.0
    %697 = vmatprep.subr.mxu0 0.0
    %698 = vmatpush1.msra.mxu0 0.0
    %699 = vmatprep.subr.mxu0 0.0
    %700 = vmatpush1.msra.mxu0 0.0
    %701 = vmatprep.subr.mxu0 0.0
    %702 = vmatpush1.msra.mxu0 0.0
    %703 = vmatprep.subr.mxu0 0.0
    %704 = vmatpush1.msra.mxu0 0.0
    %705 = vmatprep.subr.mxu0 0.0
    %706 = vmatpush1.msra.mxu0 0.0
    %707 = vmatprep.subr.mxu0 0.0
    %708 = vmatpush1.msra.mxu0 0.0
    %709 = vmatprep.subr.mxu0 0.0
    %710 = vmatpush1.msra.mxu0 0.0
    %711 = vmatprep.subr.mxu0 0.0
    %712 = vmatpush1.msra.mxu0 0.0
    %713 = vmatprep.subr.mxu0 0.0
    %714 = vmatpush1.msra.mxu0 0.0
    %715 = vmatprep.subr.mxu0 0.0
    %716 = vmatpush1.msra.mxu0 0.0
    %717 = vmatprep.subr.mxu0 0.0
    %718 = vmatpush1.msra.mxu0 0.0
    %719 = vmatprep.subr.mxu0 0.0
    %720 = vmatpush1.msra.mxu0 0.0
    %721 = vmatprep.subr.mxu0 0.0
    %722 = vmatpush1.msra.mxu0 0.0
    %723 = vmatprep.subr.mxu0 0.0
    %724 = vmatpush1.msra.mxu0 0.0
    %725 = vmatprep.subr.mxu0 0.0
    %726 = vmatpush1.msra.mxu0 0.0
    %727 = vmatprep.subr.mxu0 0.0
    %728 = vmatpush1.msra.mxu0 0.0
    %729 = vmatprep.subr.mxu0 0.0
    %730 = vmatpush1.msra.mxu0 0.0
    %731 = vmatprep.subr.mxu0 0.0
    %732 = vmatpush1.msra.mxu0 0.0
    %733 = vmatprep.subr.mxu0 0.0
    %734 = vmatpush1.msra.mxu0 0.0
    %735 = vmatprep.subr.mxu0 0.0
    %736 = vmatpush1.msra.mxu0 0.0
    %737 = vmatprep.subr.mxu0 0.0
    %738 = vmatpush1.msra.mxu0 0.0
    %739 = vmatprep.subr.mxu0 0.0
    %740 = vmatpush1.msra.mxu0 0.0
    %741 = vmatprep.subr.mxu0 0.0
    %742 = vmatpush1.msra.mxu0 0.0
    %743 = vmatprep.subr.mxu0 0.0
    %744 = vmatpush1.msra.mxu0 0.0
    %745 = vmatprep.subr.mxu0 0.0
    %746 = vmatpush1.msra.mxu0 0.0
    %747 = vmatprep.mubr.f32.mxu0 0.0
    %748 = vmatmul.mubr.f32.gmra.mrb[0].mxu0 %v681
    %v749 = vpop.f32.mrb[0].mxu0
    %v750 = vadd.f32 0.0, %v749
    %v751 = vpop.f32.mrb[0].mxu0
    %752 = vdwg.mxu0
    %v753 = vld [vmem:[#allocation4] sm:$0xff]
    %v754 = vld [vmem:[#allocation4 + $0x8] sm:$0xff]
    %756 = vset.pattern.permute.xlu0 0
    %757 = vperm.xlu0 %756, %v573
    %v758 = vpop.permute.xlu0 %757
    %761 = vset.pattern.permute.xlu0 0
    %762 = vperm.xlu0 %761, %v575
    %v763 = vpop.permute.xlu0 %762
    %v765 = vmul.f32 %v758, %v753
    %v766 = vmul.f32 %v763, %v754
    %v767 = vadd.f32 %v765, %v677
    %v768 = vadd.f32 %v766, %v750
    %769 = vst [vmem:[#allocation4] sm:$0xff] %v767
    %770 = vst [vmem:[#allocation4 + $0x8] sm:$0xff] %v768
    %771 = vst.msk [vmem:[#allocation5] sm:$0xff] %vm604, %v568
    %772 = vst.msk [vmem:[#allocation5 + $0x8] sm:$0xff] %vm604, %v569
    // Predicated region
    $region66: #{tpu_custom_call.1} parent=1 // pred_check
      %p773 = pneg %p123
    $region67: #{tpu_custom_call.1} parent=1 // pred_check_branch
      %775 = sbr.rel (%p773) target = $region69
    $region68: #{tpu_custom_call.1} parent=1 // pred_region
      %v776 = vld [vmem:[#allocation6] sm:$0xff]
      %v777 = vld [vmem:[#allocation6 + $0x8] sm:$0xff]
      %v778 = vrcp.pop %v776
      %v779 = vrcp.pop %v777
      %v780 = vld [vmem:[#allocation4] sm:$0xff]
      %v781 = vld [vmem:[#allocation4 + $0x8] sm:$0xff]
      %783 = vset.pattern.permute.xlu0 0
      %784 = vperm.xlu0 %783, %v778
      %v785 = vpop.permute.xlu0 %784
      %788 = vset.pattern.permute.xlu0 0
      %789 = vperm.xlu0 %788, %v779
      %v790 = vpop.permute.xlu0 %789
      %v792 = vmul.f32 %v780, %v785
      %v793 = vmul.f32 %v781, %v790
      %v794 = vld [vmem:[#allocation16] sm:$0xff]
      %v795 = vld [vmem:[#allocation16 + $0x8] sm:$0xff]
      %v796 = vld [vmem:[#allocation16 + $0x10] sm:$0xff]
      %v797 = vld [vmem:[#allocation16 + $0x18] sm:$0xff]
      %v798 = vld [vmem:[#allocation16 + $0x20] sm:$0xff]
      %v799 = vld [vmem:[#allocation16 + $0x28] sm:$0xff]
      %v800 = vld [vmem:[#allocation16 + $0x30] sm:$0xff]
      %v801 = vld [vmem:[#allocation16 + $0x38] sm:$0xff]
      %v802 = vld [vmem:[#allocation16 + $0x40] sm:$0xff]
      %v803 = vld [vmem:[#allocation16 + $0x48] sm:$0xff]
      %v804 = vld [vmem:[#allocation16 + $0x50] sm:$0xff]
      %v805 = vld [vmem:[#allocation16 + $0x58] sm:$0xff]
      %v806 = vld [vmem:[#allocation16 + $0x60] sm:$0xff]
      %v807 = vld [vmem:[#allocation16 + $0x68] sm:$0xff]
      %v808 = vld [vmem:[#allocation16 + $0x70] sm:$0xff]
      %v809 = vld [vmem:[#allocation16 + $0x78] sm:$0xff]
      %v810 = vld [vmem:[#allocation18 + $0x2] ss:$0 sm:$0xff]
      %811 = vmatprep.subr.mxu0 0.0
      %812 = vmatpush1.msra.mxu0 %v794
      %813 = vmatprep.subr.mxu0 0.0
      %814 = vmatpush1.msra.mxu0 %v795
      %815 = vmatprep.subr.mxu0 0.0
      %816 = vmatpush1.msra.mxu0 %v796
      %817 = vmatprep.subr.mxu0 0.0
      %818 = vmatpush1.msra.mxu0 %v797
      %819 = vmatprep.subr.mxu0 0.0
      %820 = vmatpush1.msra.mxu0 %v798
      %821 = vmatprep.subr.mxu0 0.0
      %822 = vmatpush1.msra.mxu0 %v799
      %823 = vmatprep.subr.mxu0 0.0
      %824 = vmatpush1.msra.mxu0 %v800
      %825 = vmatprep.subr.mxu0 0.0
      %826 = vmatpush1.msra.mxu0 %v801
      %827 = vmatprep.subr.mxu0 0.0
      %828 = vmatpush1.msra.mxu0 %v802
      %829 = vmatprep.subr.mxu0 0.0
      %830 = vmatpush1.msra.mxu0 %v803
      %831 = vmatprep.subr.mxu0 0.0
      %832 = vmatpush1.msra.mxu0 %v804
      %833 = vmatprep.subr.mxu0 0.0
      %834 = vmatpush1.msra.mxu0 %v805
      %835 = vmatprep.subr.mxu0 0.0
      %836 = vmatpush1.msra.mxu0 %v806
      %837 = vmatprep.subr.mxu0 0.0
      %838 = vmatpush1.msra.mxu0 %v807
      %839 = vmatprep.subr.mxu0 0.0
      %840 = vmatpush1.msra.mxu0 %v808
      %841 = vmatprep.subr.mxu0 0.0
      %842 = vmatpush1.msra.mxu0 %v809
      %843 = vmatprep.subr.mxu0 0.0
      %844 = vmatpush1.msra.mxu0 0.0
      %845 = vmatprep.subr.mxu0 0.0
      %846 = vmatpush1.msra.mxu0 0.0
      %847 = vmatprep.subr.mxu0 0.0
      %848 = vmatpush1.msra.mxu0 0.0
      %849 = vmatprep.subr.mxu0 0.0
      %850 = vmatpush1.msra.mxu0 0.0
      %851 = vmatprep.subr.mxu0 0.0
      %852 = vmatpush1.msra.mxu0 0.0
      %853 = vmatprep.subr.mxu0 0.0
      %854 = vmatpush1.msra.mxu0 0.0
      %855 = vmatprep.subr.mxu0 0.0
      %856 = vmatpush1.msra.mxu0 0.0
      %857 = vmatprep.subr.mxu0 0.0
      %858 = vmatpush1.msra.mxu0 0.0
      %859 = vmatprep.subr.mxu0 0.0
      %860 = vmatpush1.msra.mxu0 0.0
      %861 = vmatprep.subr.mxu0 0.0
      %862 = vmatpush1.msra.mxu0 0.0
      %863 = vmatprep.subr.mxu0 0.0
      %864 = vmatpush1.msra.mxu0 0.0
      %865 = vmatprep.subr.mxu0 0.0
      %866 = vmatpush1.msra.mxu0 0.0
      %867 = vmatprep.subr.mxu0 0.0
      %868 = vmatpush1.msra.mxu0 0.0
      %869 = vmatprep.subr.mxu0 0.0
      %870 = vmatpush1.msra.mxu0 0.0
      %871 = vmatprep.subr.mxu0 0.0
      %872 = vmatpush1.msra.mxu0 0.0
      %873 = vmatprep.subr.mxu0 0.0
      %874 = vmatpush1.msra.mxu0 0.0
      %875 = vmatprep.mubr.f32.mxu0 0.0
      %876 = vmatmul.mubr.f32.gmra.mrb[0].mxu0 %v792
      %v877 = vpop.f32.mrb[0].mxu0
      %v878 = vadd.f32 %v810, %v877
      %v879 = vpop.f32.mrb[0].mxu0
      %880 = vmatprep.mubr.f32.mxu0 0.0
      %881 = vmatmul.mubr.f32.gmra.mrb[0].mxu0 %v793
      %v882 = vpop.f32.mrb[0].mxu0
      %v883 = vadd.f32 %v810, %v882
      %v884 = vpop.f32.mrb[0].mxu0
      %885 = vdwg.mxu0
      %v886 = vld [vmem:[#allocation3] sm:$0xff]
      %v887 = vld [vmem:[#allocation3 + $0x8] sm:$0xff]
      %v888 = vadd.f32 %v878, %v886
      %v889 = vadd.f32 %v883, %v887
      %890 = vst [vmem:[#allocation19] sm:$0xff] %v888
      %891 = vst [vmem:[#allocation19 + $0x8] sm:$0xff] %v889
    $region69: #{tpu_custom_call.1} parent=1 // pred_fallthru
      _
    // Predicated region
    $region70: #{tpu_custom_call.1} parent=1 // pred_check
      _
    $region71: #{tpu_custom_call.1} parent=1 // pred_check_branch
      %893 = sbr.rel (0) target = $region73
    $region72: #{tpu_custom_call.1} parent=1 // pred_region
      %s895 = ssub.s32 256, 256
      %896 = vsyncadd [#allocation9], %s895
      %s897 = sshll.u32 [#allocation19], 4
      %s898 = int_to_ptr.vmem [resolvable:$true] %s897
      %903 = dma.vmem_to_hbm [thread:$0]  %s898, 256, %s8, [#allocation9], 128, 128, 8
    $region73: #{tpu_custom_call.1} parent=1 // pred_fallthru
      _
    // Predicated region
    $region74: #{tpu_custom_call.1} parent=1 // pred_check
      _
    $region75: #{tpu_custom_call.1} parent=1 // pred_check_branch
      %905 = sbr.rel (0) target = $region77
    $region76: #{tpu_custom_call.1} parent=1 // pred_region
      %906 = dma.done [#allocation9], 256
    $region77: #{tpu_custom_call.1} parent=1 // pred_fallthru
      _
    %907 = vsyncpa [#allocation8], 1
    %908 = vsyncpa [#allocation11], 1
    %909 = vsyncpa [#allocation14], 1
    %910 = vsyncpa [#allocation17], 1
    %911 = vsyncpa [#allocation9], 1

// kernel: tpu_custom_call.1
$region0: #{tpu_custom_call.1}
  #allocation0 [shape = 'u32[]', space=smem, size = 0x4, offset = 0x4, fixed_abs, tag = 'smem constant byte address 0x4 - core index']
  #allocation1 [shape = 'u32[144,128]{1,0:T(1,128)}', space=vmem, size = 0x12000, scoped, tag = 'internal scratch']
  #allocation2 [shape = 'f32[2,8,128]{2,1,0:T(8,128)}', space=vmem, size = 0x2000, scoped, tag = 'scratch operand']
  #allocation3 [shape = 'f32[16,128]{1,0:T(8,128)}', space=vmem, size = 0x2000, scoped, tag = 'scratch operand']
  #allocation4 [shape = 'f32[2,8,128]{2,1,0:T(8,128)}', space=vmem, size = 0x2000, scoped, tag = 'scratch operand']
  #allocation5 [shape = 'f32[2,8,1]{2,1,0:T(8,128)}', space=vmem, size = 0x2000, scoped, tag = 'scratch operand']
  #allocation6 [shape = 'f32[2,8,1]{2,1,0:T(8,128)}', space=vmem, size = 0x2000, scoped, tag = 'scratch operand']
  %s0 = inlined_call_operand.hbm [shape: f32[2,8,32], index: 0, kind: input, shape index: {}]
  %s1 = inlined_call_operand.hbm [shape: f32[2,8,16], index: 1, kind: input, shape index: {}]
  %s2 = inlined_call_operand.hbm [shape: f32[2,8,16], index: 2, kind: input, shape index: {}]
  %s3 = inlined_call_operand.hbm [shape: f32[32,256], index: 3, kind: input, shape index: {}]
  %s4 = inlined_call_operand.hbm [shape: f32[16,128], index: 4, kind: input, shape index: {}]
  %s5 = inlined_call_operand.vmem [shape: f32[16,128], index: 5, kind: input, shape index: {}]
  %s6 = inlined_call_operand.hbm [shape: f32[128,128], index: 6, kind: input, shape index: {}]
  %s7 = inlined_call_operand.hbm [shape: f32[8,256], index: 7, kind: input, shape index: {}]
  %s8 = inlined_call_operand.hbm [shape: f32[2,8,128], index: 8, kind: output, shape index: {}]
  %s9 = sld [smem:[#allocation0]]
  $region78: #{tpu_custom_call.1} parent=0
    _
  %s11 = ssub.s32 1, %s9
  %s12 = scalar_select 0, %s11, %s9
  $region1: #{tpu_custom_call.1} parent=0
    #allocation7 [shape = 'u8[8192]{0}', space=vmem, size = 0x2000, scoped, tag = 'input window, operand 0, single buffered']
    #allocation8 [shape = 's32[1]{0}', space=sflag, size = 0x4, scoped, tag = 'scoped memory for tpu_custom_call.1']
    #allocation9 [shape = 's32[1]{0}', space=sflag, size = 0x4, scoped, tag = 'scoped memory for tpu_custom_call.1']
    #allocation10 [shape = 'u8[8192]{0}', space=vmem, size = 0x2000, scoped, tag = 'input window, operand 1, single buffered']
    #allocation11 [shape = 's32[1]{0}', space=sflag, size = 0x4, scoped, tag = 'scoped memory for tpu_custom_call.1']
    #allocation12 [shape = 'u8[8192]{0}', space=vmem, size = 0x2000, scoped, tag = 'input window, operand 2, single buffered']
    #allocation13 [shape = 'u8[32768]{0}', space=vmem, size = 0x8000, scoped, tag = 'input window, operand 3, single buffered']
    #allocation14 [shape = 's32[1]{0}', space=sflag, size = 0x4, scoped, tag = 'scoped memory for tpu_custom_call.1']
    #allocation15 [shape = 'u8[8192]{0}', space=vmem, size = 0x2000, scoped, tag = 'input window, operand 4, single buffered']
    #allocation16 [shape = 'u8[65536]{0}', space=vmem, size = 0x10000, scoped, tag = 'input window, operand 6, single buffered']
    #allocation17 [shape = 's32[1]{0}', space=sflag, size = 0x4, scoped, tag = 'scoped memory for tpu_custom_call.1']
    #allocation18 [shape = 'u8[8192]{0}', space=vmem, size = 0x2000, scoped, tag = 'input window, operand 7, single buffered']
    #allocation19 [shape = 'u8[8192]{0}', space=vmem, size = 0x2000, scoped, tag = 'output window, operand 0, single buffered']
    %13 = vsyncpa [#allocation8], 0
    %14 = vsyncpa [#allocation11], 0
    %15 = vsyncpa [#allocation14], 0
    %16 = vsyncpa [#allocation17], 0
    %17 = vsyncpa [#allocation9], 0
    // Predicated region
    $region2: #{tpu_custom_call.1} parent=1 // pred_check
      _
    $region3: #{tpu_custom_call.1} parent=1 // pred_check_branch
      %19 = sbr.rel (0) target = $region5
    $region4: #{tpu_custom_call.1} parent=1 // pred_region
      %s21 = ssub.s32 256, 256
      %22 = vsyncadd [#allocation8], %s21
      %s23 = sshll.u32 [#allocation7], 4
      %s24 = int_to_ptr.vmem [resolvable:$true] %s23
      %29 = dma.hbm_to_vmem [thread:$0]  %s0, 256, %s24, [#allocation8], 128, 128, 8
    $region5: #{tpu_custom_call.1} parent=1 // pred_fallthru
      _
    // Predicated region
    $region6: #{tpu_custom_call.1} parent=1 // pred_check
      _
    $region7: #{tpu_custom_call.1} parent=1 // pred_check_branch
      %31 = sbr.rel (0) target = $region9
    $region8: #{tpu_custom_call.1} parent=1 // pred_region
      %s33 = ssub.s32 256, 256
      %34 = vsyncadd [#allocation11], %s33
      %s35 = sshll.u32 [#allocation10], 4
      %s36 = int_to_ptr.vmem [resolvable:$true] %s35
      %41 = dma.hbm_to_vmem [thread:$0]  %s1, 256, %s36, [#allocation11], 128, 128, 8
    $region9: #{tpu_custom_call.1} parent=1 // pred_fallthru
      _
    // Predicated region
    $region10: #{tpu_custom_call.1} parent=1 // pred_check
      _
    $region11: #{tpu_custom_call.1} parent=1 // pred_check_branch
      %43 = sbr.rel (0) target = $region13
    $region12: #{tpu_custom_call.1} parent=1 // pred_region
      %s45 = ssub.s32 256, 256
      %46 = vsyncadd [#allocation11], %s45
      %s47 = sshll.u32 [#allocation12], 4
      %s48 = int_to_ptr.vmem [resolvable:$true] %s47
      %53 = dma.hbm_to_vmem [thread:$0]  %s2, 256, %s48, [#allocation11], 128, 128, 8
    $region13: #{tpu_custom_call.1} parent=1 // pred_fallthru
      _
    // Predicated region
    $region14: #{tpu_custom_call.1} parent=1 // pred_check
      _
    $region15: #{tpu_custom_call.1} parent=1 // pred_check_branch
      %55 = sbr.rel (0) target = $region17
    $region16: #{tpu_custom_call.1} parent=1 // pred_region
      %s57 = ssub.s32 1024, 1024
      %58 = vsyncadd [#allocation14], %s57
      %s59 = sshll.u32 [#allocation13], 4
      %s60 = int_to_ptr.vmem [resolvable:$true] %s59
      %65 = dma.hbm_to_vmem [thread:$0]  %s3, 1024, %s60, [#allocation14], 256, 256, 16
    $region17: #{tpu_custom_call.1} parent=1 // pred_fallthru
      _
    // Predicated region
    $region18: #{tpu_custom_call.1} parent=1 // pred_check
      _
    $region19: #{tpu_custom_call.1} parent=1 // pred_check_branch
      %67 = sbr.rel (0) target = $region21
    $region20: #{tpu_custom_call.1} parent=1 // pred_region
      %s69 = ssub.s32 256, 256
      %70 = vsyncadd [#allocation14], %s69
      %s71 = sshll.u32 [#allocation15], 4
      %s72 = int_to_ptr.vmem [resolvable:$true] %s71
      %77 = dma.hbm_to_vmem [thread:$0]  %s4, 256, %s72, [#allocation14], 128, 128, 8
    $region21: #{tpu_custom_call.1} parent=1 // pred_fallthru
      _
    // Predicated region
    $region22: #{tpu_custom_call.1} parent=1 // pred_check
      _
    $region23: #{tpu_custom_call.1} parent=1 // pred_check_branch
      %79 = sbr.rel (0) target = $region25
    $region24: #{tpu_custom_call.1} parent=1 // pred_region
      _
    $region25: #{tpu_custom_call.1} parent=1 // pred_fallthru
      _
    // Predicated region
    $region26: #{tpu_custom_call.1} parent=1 // pred_check
      _
    $region27: #{tpu_custom_call.1} parent=1 // pred_check_branch
      %81 = sbr.rel (0) target = $region29
    $region28: #{tpu_custom_call.1} parent=1 // pred_region
      %s83 = ssub.s32 2048, 2048
      %84 = vsyncadd [#allocation17], %s83
      %s85 = sshll.u32 [#allocation16], 4
      %s86 = int_to_ptr.vmem [resolvable:$true] %s85
      %91 = dma.hbm_to_vmem [thread:$0]  %s6, 2048, %s86, [#allocation17], 128, 128, 8
    $region29: #{tpu_custom_call.1} parent=1 // pred_fallthru
      _
    // Predicated region
    $region30: #{tpu_custom_call.1} parent=1 // pred_check
      _
    $region31: #{tpu_custom_call.1} parent=1 // pred_check_branch
      %93 = sbr.rel (0) target = $region33
    $region32: #{tpu_custom_call.1} parent=1 // pred_region
      %s95 = ssub.s32 256, 256
      %96 = vsyncadd [#allocation17], %s95
      %s98 = sshll.u32 [#allocation18], 4
      %s99 = int_to_ptr.vmem [resolvable:$true] %s98
      %101 = dma.hbm_to_vmem [thread:$0]  %s7, 256, %s99, [#allocation17]
    $region33: #{tpu_custom_call.1} parent=1 // pred_fallthru
      _
    // Predicated region
    $region34: #{tpu_custom_call.1} parent=1 // pred_check
      _
    $region35: #{tpu_custom_call.1} parent=1 // pred_check_branch
      %103 = sbr.rel (0) target = $region37
    $region36: #{tpu_custom_call.1} parent=1 // pred_region
      %104 = dma.done [#allocation8], 256
    $region37: #{tpu_custom_call.1} parent=1 // pred_fallthru
      _
    // Predicated region
    $region38: #{tpu_custom_call.1} parent=1 // pred_check
      _
    $region39: #{tpu_custom_call.1} parent=1 // pred_check_branch
      %106 = sbr.rel (0) target = $region41
    $region40: #{tpu_custom_call.1} parent=1 // pred_region
      %107 = dma.done [#allocation11], 256
    $region41: #{tpu_custom_call.1} parent=1 // pred_fallthru
      _
    // Predicated region
    $region42: #{tpu_custom_call.1} parent=1 // pred_check
      _
    $region43: #{tpu_custom_call.1} parent=1 // pred_check_branch
      %109 = sbr.rel (0) target = $region45
    $region44: #{tpu_custom_call.1} parent=1 // pred_region
      %110 = dma.done [#allocation11], 256
    $region45: #{tpu_custom_call.1} parent=1 // pred_fallthru
      _
    // Predicated region
    $region46: #{tpu_custom_call.1} parent=1 // pred_check
      _
    $region47: #{tpu_custom_call.1} parent=1 // pred_check_branch
      %112 = sbr.rel (0) target = $region49
    $region48: #{tpu_custom_call.1} parent=1 // pred_region
      %113 = dma.done [#allocation14], 1024
    $region49: #{tpu_custom_call.1} parent=1 // pred_fallthru
      _
    // Predicated region
    $region50: #{tpu_custom_call.1} parent=1 // pred_check
      _
    $region51: #{tpu_custom_call.1} parent=1 // pred_check_branch
      %115 = sbr.rel (0) target = $region53
    $region52: #{tpu_custom_call.1} parent=1 // pred_region
      %116 = dma.done [#allocation14], 256
    $region53: #{tpu_custom_call.1} parent=1 // pred_fallthru
      _
    // Predicated region
    $region54: #{tpu_custom_call.1} parent=1 // pred_check
      _
    $region55: #{tpu_custom_call.1} parent=1 // pred_check_branch
      %118 = sbr.rel (0) target = $region57
    $region56: #{tpu_custom_call.1} parent=1 // pred_region
      %119 = dma.done [#allocation17], 2048
    $region57: #{tpu_custom_call.1} parent=1 // pred_fallthru
      _
    // Predicated region
    $region58: #{tpu_custom_call.1} parent=1 // pred_check
      _
    $region59: #{tpu_custom_call.1} parent=1 // pred_check_branch
      %121 = sbr.rel (0) target = $region61
    $region60: #{tpu_custom_call.1} parent=1 // pred_region
      %122 = dma.done [#allocation17], 256
    $region61: #{tpu_custom_call.1} parent=1 // pred_fallthru
      _
    %p123 = scmp.eq.s32.totalorder 0, 0
    // Predicated region
    $region62: #{tpu_custom_call.1} parent=1 // pred_check
      %p124 = pneg %p123
    $region63: #{tpu_custom_call.1} parent=1 // pred_check_branch
      %126 = sbr.rel (%p124) target = $region65
    $region64: #{tpu_custom_call.1} parent=1 // pred_region
      %v127 = vld [vmem:[#allocation7] sm:$0xff]
      %v128 = vld [vmem:[#allocation7 + $0x8] sm:$0xff]
      %v129 = vld [vmem:[#allocation13] sm:$0xff]
      %v130 = vld [vmem:[#allocation13 + $0x8] sm:$0xff]
      %v131 = vld [vmem:[#allocation13 + $0x10] sm:$0xff]
      %v132 = vld [vmem:[#allocation13 + $0x18] sm:$0xff]
      %v133 = vld [vmem:[#allocation13 + $0x20] sm:$0xff]
      %v134 = vld [vmem:[#allocation13 + $0x28] sm:$0xff]
      %v135 = vld [vmem:[#allocation13 + $0x30] sm:$0xff]
      %v136 = vld [vmem:[#allocation13 + $0x38] sm:$0xff]
      %v137 = vld [vmem:[#allocation18] ss:$8 sm:$0x3]
      %v139 = vlaneseq
      %v140 = vshrl.u32 %v139, 7
      %v141 = vsub.s32 0, %v140
      %v142 = vrot.slane %v137, %v141
      %v143 = vlaneseq
      %v144 = vshrl.u32 %v143, 7
      %v145 = vsub.s32 1, %v144
      %v146 = vrot.slane %v137, %v145
      %vm149 = vcmask 261120
      %v151 = vsel %vm149, %v127, 0
      %v154 = vsel %vm149, %v128, 0
      %156 = vmatprep.subr.mxu0 %v130
      %157 = vmatpush1.msra.mxu0 %v129
      %158 = vmatprep.subr.mxu0 %v132
      %159 = vmatpush1.msra.mxu0 %v131
      %160 = vmatprep.subr.mxu0 %v134
      %161 = vmatpush1.msra.mxu0 %v133
      %162 = vmatprep.subr.mxu0 %v136
      %163 = vmatpush1.msra.mxu0 %v135
      %164 = vmatprep.subr.mxu0 0.0
      %165 = vmatpush1.msra.mxu0 0.0
      %166 = vmatprep.subr.mxu0 0.0
      %167 = vmatpush1.msra.mxu0 0.0
      %168 = vmatprep.subr.mxu0 0.0
      %169 = vmatpush1.msra.mxu0 0.0
      %170 = vmatprep.subr.mxu0 0.0
      %171 = vmatpush1.msra.mxu0 0.0
      %172 = vmatprep.subr.mxu0 0.0
      %173 = vmatpush1.msra.mxu0 0.0
      %174 = vmatprep.subr.mxu0 0.0
      %175 = vmatpush1.msra.mxu0 0.0
      %176 = vmatprep.subr.mxu0 0.0
      %177 = vmatpush1.msra.mxu0 0.0
      %178 = vmatprep.subr.mxu0 0.0
      %179 = vmatpush1.msra.mxu0 0.0
      %180 = vmatprep.subr.mxu0 0.0
      %181 = vmatpush1.msra.mxu0 0.0
      %182 = vmatprep.subr.mxu0 0.0
      %183 = vmatpush1.msra.mxu0 0.0
      %184 = vmatprep.subr.mxu0 0.0
      %185 = vmatpush1.msra.mxu0 0.0
      %186 = vmatprep.subr.mxu0 0.0
      %187 = vmatpush1.msra.mxu0 0.0
      %188 = vmatprep.subr.mxu0 0.0
      %189 = vmatpush1.msra.mxu0 0.0
      %190 = vmatprep.subr.mxu0 0.0
      %191 = vmatpush1.msra.mxu0 0.0
      %192 = vmatprep.subr.mxu0 0.0
      %193 = vmatpush1.msra.mxu0 0.0
      %194 = vmatprep.subr.mxu0 0.0
      %195 = vmatpush1.msra.mxu0 0.0
      %196 = vmatprep.subr.mxu0 0.0
      %197 = vmatpush1.msra.mxu0 0.0
      %198 = vmatprep.subr.mxu0 0.0
      %199 = vmatpush1.msra.mxu0 0.0
      %200 = vmatprep.subr.mxu0 0.0
      %201 = vmatpush1.msra.mxu0 0.0
      %202 = vmatprep.subr.mxu0 0.0
      %203 = vmatpush1.msra.mxu0 0.0
      %204 = vmatprep.subr.mxu0 0.0
      %205 = vmatpush1.msra.mxu0 0.0
      %206 = vmatprep.subr.mxu0 0.0
      %207 = vmatpush1.msra.mxu0 0.0
      %208 = vmatprep.subr.mxu0 0.0
      %209 = vmatpush1.msra.mxu0 0.0
      %210 = vmatprep.subr.mxu0 0.0
      %211 = vmatpush1.msra.mxu0 0.0
      %212 = vmatprep.subr.mxu0 0.0
      %213 = vmatpush1.msra.mxu0 0.0
      %214 = vmatprep.subr.mxu0 0.0
      %215 = vmatpush1.msra.mxu0 0.0
      %216 = vmatprep.subr.mxu0 0.0
      %217 = vmatpush1.msra.mxu0 0.0
      %218 = vmatprep.subr.mxu0 0.0
      %219 = vmatpush1.msra.mxu0 0.0
      %220 = vmatprep.mubr.f32.mxu0 0.0
      %221 = vmatmul.mubr.f32.gmra.mrb[0].mxu0 %v151
      %v222 = vpop.f32.mrb[0].mxu0
      %v223 = vadd.f32 %v142, %v222
      %v224 = vpop.f32.mrb[0].mxu0
      %v225 = vadd.f32 %v146, %v224
      %226 = vmatprep.mubr.f32.mxu0 0.0
      %227 = vmatmul.mubr.f32.gmra.mrb[0].mxu0 %v154
      %v228 = vpop.f32.mrb[0].mxu0
      %v229 = vadd.f32 %v142, %v228
      %v230 = vpop.f32.mrb[0].mxu0
      %v231 = vadd.f32 %v146, %v230
      %232 = vdwg.mxu0
      %233 = vst [vmem:[#allocation2] sm:$0xff] %v223
      %234 = vst [vmem:[#allocation2 + $0x8] sm:$0xff] %v229
      %235 = vst [vmem:[#allocation3] sm:$0xff] %v225
      %236 = vst [vmem:[#allocation3 + $0x8] sm:$0xff] %v231
      %vm237 = vcmask 7168
      %238 = vst.msk [vmem:[#allocation5] sm:$0xff] %vm237, -inf
      %239 = vst.msk [vmem:[#allocation5 + $0x8] sm:$0xff] %vm237, -inf
      %240 = vst.msk [vmem:[#allocation6] sm:$0xff] %vm237, 0.0
      %241 = vst.msk [vmem:[#allocation6 + $0x8] sm:$0xff] %vm237, 0.0
      %242 = vst [vmem:[#allocation4] sm:$0xff] 0.0
      %243 = vst [vmem:[#allocation4 + $0x8] sm:$0xff] 0.0
    $region65: #{tpu_custom_call.1} parent=1 // pred_fallthru
      _
    %v244 = vld [vmem:[#allocation10] sm:$0xff]
    %v245 = vld [vmem:[#allocation10 + $0x8] sm:$0xff]
    %v246 = vld [vmem:[#allocation12] sm:$0xff]
    %v247 = vld [vmem:[#allocation12 + $0x8] sm:$0xff]
    %v248 = vld [vmem:[#allocation15] sm:$0xff]
    %v249 = vld [vmem:[#allocation15 + $0x8] sm:$0xff]
    %v250 = vld [vmem:[#allocation18 + $0x1] ss:$0 sm:$0xff]
    %vm251 = vcmask 130048
    %v253 = vsel %vm251, %v244, 0
    %v256 = vsel %vm251, %v245, 0
    %258 = vmatprep.subr.mxu0 0.0
    %259 = vmatpush1.msra.mxu0 %v248
    %260 = vmatprep.subr.mxu0 0.0
    %261 = vmatpush1.msra.mxu0 %v249
    %262 = vmatprep.subr.mxu0 0.0
    %263 = vmatpush1.msra.mxu0 0.0
    %264 = vmatprep.subr.mxu0 0.0
    %265 = vmatpush1.msra.mxu0 0.0
    %266 = vmatprep.subr.mxu0 0.0
    %267 = vmatpush1.msra.mxu0 0.0
    %268 = vmatprep.subr.mxu0 0.0
    %269 = vmatpush1.msra.mxu0 0.0
    %270 = vmatprep.subr.mxu0 0.0
    %271 = vmatpush1.msra.mxu0 0.0
    %272 = vmatprep.subr.mxu0 0.0
    %273 = vmatpush1.msra.mxu0 0.0
    %274 = vmatprep.subr.mxu0 0.0
    %275 = vmatpush1.msra.mxu0 0.0
    %276 = vmatprep.subr.mxu0 0.0
    %277 = vmatpush1.msra.mxu0 0.0
    %278 = vmatprep.subr.mxu0 0.0
    %279 = vmatpush1.msra.mxu0 0.0
    %280 = vmatprep.subr.mxu0 0.0
    %281 = vmatpush1.msra.mxu0 0.0
    %282 = vmatprep.subr.mxu0 0.0
    %283 = vmatpush1.msra.mxu0 0.0
    %284 = vmatprep.subr.mxu0 0.0
    %285 = vmatpush1.msra.mxu0 0.0
    %286 = vmatprep.subr.mxu0 0.0
    %287 = vmatpush1.msra.mxu0 0.0
    %288 = vmatprep.subr.mxu0 0.0
    %289 = vmatpush1.msra.mxu0 0.0
    %290 = vmatprep.subr.mxu0 0.0
    %291 = vmatpush1.msra.mxu0 0.0
    %292 = vmatprep.subr.mxu0 0.0
    %293 = vmatpush1.msra.mxu0 0.0
    %294 = vmatprep.subr.mxu0 0.0
    %295 = vmatpush1.msra.mxu0 0.0
    %296 = vmatprep.subr.mxu0 0.0
    %297 = vmatpush1.msra.mxu0 0.0
    %298 = vmatprep.subr.mxu0 0.0
    %299 = vmatpush1.msra.mxu0 0.0
    %300 = vmatprep.subr.mxu0 0.0
    %301 = vmatpush1.msra.mxu0 0.0
    %302 = vmatprep.subr.mxu0 0.0
    %303 = vmatpush1.msra.mxu0 0.0
    %304 = vmatprep.subr.mxu0 0.0
    %305 = vmatpush1.msra.mxu0 0.0
    %306 = vmatprep.subr.mxu0 0.0
    %307 = vmatpush1.msra.mxu0 0.0
    %308 = vmatprep.subr.mxu0 0.0
    %309 = vmatpush1.msra.mxu0 0.0
    %310 = vmatprep.subr.mxu0 0.0
    %311 = vmatpush1.msra.mxu0 0.0
    %312 = vmatprep.subr.mxu0 0.0
    %313 = vmatpush1.msra.mxu0 0.0
    %314 = vmatprep.subr.mxu0 0.0
    %315 = vmatpush1.msra.mxu0 0.0
    %316 = vmatprep.subr.mxu0 0.0
    %317 = vmatpush1.msra.mxu0 0.0
    %318 = vmatprep.subr.mxu0 0.0
    %319 = vmatpush1.msra.mxu0 0.0
    %320 = vmatprep.subr.mxu0 0.0
    %321 = vmatpush1.msra.mxu0 0.0
    %322 = vmatprep.mubr.f32.mxu0 0.0
    %323 = vmatmul.mubr.f32.gmra.mrb[0].mxu0 %v253
    %v324 = vpop.f32.mrb[0].mxu0
    %v325 = vadd.f32 %v250, %v324
    %v326 = vpop.f32.mrb[0].mxu0
    %327 = vmatprep.mubr.f32.mxu0 0.0
    %328 = vmatmul.mubr.f32.gmra.mrb[0].mxu0 %v256
    %v329 = vpop.f32.mrb[0].mxu0
    %v330 = vadd.f32 %v250, %v329
    %v331 = vpop.f32.mrb[0].mxu0
    %332 = vdwg.mxu0
    %v333 = vld [vmem:[%s5] sm:$0xff]
    %v334 = vld [vmem:[%s5 + $0x8] sm:$0xff]
    %v335 = vld [vmem:[#allocation18 + $0x9] ss:$0 sm:$0xff]
    %v337 = vsel %vm251, %v246, 0
    %v340 = vsel %vm251, %v247, 0
    %342 = vmatprep.subr.mxu0 0.0
    %343 = vmatpush1.msra.mxu0 %v333
    %344 = vmatprep.subr.mxu0 0.0
    %345 = vmatpush1.msra.mxu0 %v334
    %346 = vmatprep.subr.mxu0 0.0
    %347 = vmatpush1.msra.mxu0 0.0
    %348 = vmatprep.subr.mxu0 0.0
    %349 = vmatpush1.msra.mxu0 0.0
    %350 = vmatprep.subr.mxu0 0.0
    %351 = vmatpush1.msra.mxu0 0.0
    %352 = vmatprep.subr.mxu0 0.0
    %353 = vmatpush1.msra.mxu0 0.0
    %354 = vmatprep.subr.mxu0 0.0
    %355 = vmatpush1.msra.mxu0 0.0
    %356 = vmatprep.subr.mxu0 0.0
    %357 = vmatpush1.msra.mxu0 0.0
    %358 = vmatprep.subr.mxu0 0.0
    %359 = vmatpush1.msra.mxu0 0.0
    %360 = vmatprep.subr.mxu0 0.0
    %361 = vmatpush1.msra.mxu0 0.0
    %362 = vmatprep.subr.mxu0 0.0
    %363 = vmatpush1.msra.mxu0 0.0
    %364 = vmatprep.subr.mxu0 0.0
    %365 = vmatpush1.msra.mxu0 0.0
    %366 = vmatprep.subr.mxu0 0.0
    %367 = vmatpush1.msra.mxu0 0.0
    %368 = vmatprep.subr.mxu0 0.0
    %369 = vmatpush1.msra.mxu0 0.0
    %370 = vmatprep.subr.mxu0 0.0
    %371 = vmatpush1.msra.mxu0 0.0
    %372 = vmatprep.subr.mxu0 0.0
    %373 = vmatpush1.msra.mxu0 0.0
    %374 = vmatprep.subr.mxu0 0.0
    %375 = vmatpush1.msra.mxu0 0.0
    %376 = vmatprep.subr.mxu0 0.0
    %377 = vmatpush1.msra.mxu0 0.0
    %378 = vmatprep.subr.mxu0 0.0
    %379 = vmatpush1.msra.mxu0 0.0
    %380 = vmatprep.subr.mxu0 0.0
    %381 = vmatpush1.msra.mxu0 0.0
    %382 = vmatprep.subr.mxu0 0.0
    %383 = vmatpush1.msra.mxu0 0.0
    %384 = vmatprep.subr.mxu0 0.0
    %385 = vmatpush1.msra.mxu0 0.0
    %386 = vmatprep.subr.mxu0 0.0
    %387 = vmatpush1.msra.mxu0 0.0
    %388 = vmatprep.subr.mxu0 0.0
    %389 = vmatpush1.msra.mxu0 0.0
    %390 = vmatprep.subr.mxu0 0.0
    %391 = vmatpush1.msra.mxu0 0.0
    %392 = vmatprep.subr.mxu0 0.0
    %393 = vmatpush1.msra.mxu0 0.0
    %394 = vmatprep.subr.mxu0 0.0
    %395 = vmatpush1.msra.mxu0 0.0
    %396 = vmatprep.subr.mxu0 0.0
    %397 = vmatpush1.msra.mxu0 0.0
    %398 = vmatprep.subr.mxu0 0.0
    %399 = vmatpush1.msra.mxu0 0.0
    %400 = vmatprep.subr.mxu0 0.0
    %401 = vmatpush1.msra.mxu0 0.0
    %402 = vmatprep.subr.mxu0 0.0
    %403 = vmatpush1.msra.mxu0 0.0
    %404 = vmatprep.subr.mxu0 0.0
    %405 = vmatpush1.msra.mxu0 0.0
    %406 = vmatprep.mubr.f32.mxu0 0.0
    %407 = vmatmul.mubr.f32.gmra.mrb[0].mxu0 %v337
    %v408 = vpop.f32.mrb[0].mxu0
    %v409 = vadd.f32 %v335, %v408
    %v410 = vpop.f32.mrb[0].mxu0
    %411 = vmatprep.mubr.f32.mxu0 0.0
    %412 = vmatmul.mubr.f32.gmra.mrb[0].mxu0 %v340
    %v413 = vpop.f32.mrb[0].mxu0
    %v414 = vadd.f32 %v335, %v413
    %v415 = vpop.f32.mrb[0].mxu0
    %416 = vdwg.mxu0
    %v417 = vld [vmem:[#allocation2] sm:$0xff]
    %v418 = vld [vmem:[#allocation2 + $0x8] sm:$0xff]
    %419 = vmatprep.subr.mxu0 0.0
    %420 = vmatpush1.xpose.msra.mxu0 %v325
    %421 = vmatprep.subr.mxu0 0.0
    %422 = vmatpush1.xpose.msra.mxu0 0.0
    %423 = vmatprep.subr.mxu0 0.0
    %424 = vmatpush1.xpose.msra.mxu0 0.0
    %425 = vmatprep.subr.mxu0 0.0
    %426 = vmatpush1.xpose.msra.mxu0 0.0
    %427 = vmatprep.subr.mxu0 0.0
    %428 = vmatpush1.xpose.msra.mxu0 0.0
    %429 = vmatprep.subr.mxu0 0.0
    %430 = vmatpush1.xpose.msra.mxu0 0.0
    %431 = vmatprep.subr.mxu0 0.0
    %432 = vmatpush1.xpose.msra.mxu0 0.0
    %433 = vmatprep.subr.mxu0 0.0
    %434 = vmatpush1.xpose.msra.mxu0 0.0
    %435 = vmatprep.subr.mxu0 0.0
    %436 = vmatpush1.xpose.msra.mxu0 0.0
    %437 = vmatprep.subr.mxu0 0.0
    %438 = vmatpush1.xpose.msra.mxu0 0.0
    %439 = vmatprep.subr.mxu0 0.0
    %440 = vmatpush1.xpose.msra.mxu0 0.0
    %441 = vmatprep.subr.mxu0 0.0
    %442 = vmatpush1.xpose.msra.mxu0 0.0
    %443 = vmatprep.subr.mxu0 0.0
    %444 = vmatpush1.xpose.msra.mxu0 0.0
    %445 = vmatprep.subr.mxu0 0.0
    %446 = vmatpush1.xpose.msra.mxu0 0.0
    %447 = vmatprep.subr.mxu0 0.0
    %448 = vmatpush1.xpose.msra.mxu0 0.0
    %449 = vmatprep.subr.mxu0 0.0
    %450 = vmatpush1.xpose.msra.mxu0 0.0
    %451 = vmatprep.subr.mxu0 0.0
    %452 = vmatpush1.xpose.msra.mxu0 0.0
    %453 = vmatprep.subr.mxu0 0.0
    %454 = vmatpush1.xpose.msra.mxu0 0.0
    %455 = vmatprep.subr.mxu0 0.0
    %456 = vmatpush1.xpose.msra.mxu0 0.0
    %457 = vmatprep.subr.mxu0 0.0
    %458 = vmatpush1.xpose.msra.mxu0 0.0
    %459 = vmatprep.subr.mxu0 0.0
    %460 = vmatpush1.xpose.msra.mxu0 0.0
    %461 = vmatprep.subr.mxu0 0.0
    %462 = vmatpush1.xpose.msra.mxu0 0.0
    %463 = vmatprep.subr.mxu0 0.0
    %464 = vmatpush1.xpose.msra.mxu0 0.0
    %465 = vmatprep.subr.mxu0 0.0
    %466 = vmatpush1.xpose.msra.mxu0 0.0
    %467 = vmatprep.subr.mxu0 0.0
    %468 = vmatpush1.xpose.msra.mxu0 0.0
    %469 = vmatprep.subr.mxu0 0.0
    %470 = vmatpush1.xpose.msra.mxu0 0.0
    %471 = vmatprep.subr.mxu0 0.0
    %472 = vmatpush1.xpose.msra.mxu0 0.0
    %473 = vmatprep.subr.mxu0 0.0
    %474 = vmatpush1.xpose.msra.mxu0 0.0
    %475 = vmatprep.subr.mxu0 0.0
    %476 = vmatpush1.xpose.msra.mxu0 0.0
    %477 = vmatprep.subr.mxu0 0.0
    %478 = vmatpush1.xpose.msra.mxu0 0.0
    %479 = vmatprep.subr.mxu0 0.0
    %480 = vmatpush1.xpose.msra.mxu0 0.0
    %481 = vmatprep.subr.mxu0 0.0
    %482 = vmatpush1.xpose.msra.mxu0 0.0
    %483 = vmatprep.mubr.f32.mxu0 0.0
    %484 = vmatmul.mubr.f32.gmra.mrb[0].mxu0 %v417
    %v485 = vpop.f32.mrb[0].mxu0
    %v486 = vadd.f32 0.0, %v485
    %v487 = vpop.f32.mrb[0].mxu0
    %488 = vdwg.mxu0
    %489 = vmatprep.subr.mxu0 0.0
    %490 = vmatpush1.xpose.msra.mxu0 %v330
    %491 = vmatprep.subr.mxu0 0.0
    %492 = vmatpush1.xpose.msra.mxu0 0.0
    %493 = vmatprep.subr.mxu0 0.0
    %494 = vmatpush1.xpose.msra.mxu0 0.0
    %495 = vmatprep.subr.mxu0 0.0
    %496 = vmatpush1.xpose.msra.mxu0 0.0
    %497 = vmatprep.subr.mxu0 0.0
    %498 = vmatpush1.xpose.msra.mxu0 0.0
    %499 = vmatprep.subr.mxu0 0.0
    %500 = vmatpush1.xpose.msra.mxu0 0.0
    %501 = vmatprep.subr.mxu0 0.0
    %502 = vmatpush1.xpose.msra.mxu0 0.0
    %503 = vmatprep.subr.mxu0 0.0
    %504 = vmatpush1.xpose.msra.mxu0 0.0
    %505 = vmatprep.subr.mxu0 0.0
    %506 = vmatpush1.xpose.msra.mxu0 0.0
    %507 = vmatprep.subr.mxu0 0.0
    %508 = vmatpush1.xpose.msra.mxu0 0.0
    %509 = vmatprep.subr.mxu0 0.0
    %510 = vmatpush1.xpose.msra.mxu0 0.0
    %511 = vmatprep.subr.mxu0 0.0
    %512 = vmatpush1.xpose.msra.mxu0 0.0
    %513 = vmatprep.subr.mxu0 0.0
    %514 = vmatpush1.xpose.msra.mxu0 0.0
    %515 = vmatprep.subr.mxu0 0.0
    %516 = vmatpush1.xpose.msra.mxu0 0.0
    %517 = vmatprep.subr.mxu0 0.0
    %518 = vmatpush1.xpose.msra.mxu0 0.0
    %519 = vmatprep.subr.mxu0 0.0
    %520 = vmatpush1.xpose.msra.mxu0 0.0
    %521 = vmatprep.subr.mxu0 0.0
    %522 = vmatpush1.xpose.msra.mxu0 0.0
    %523 = vmatprep.subr.mxu0 0.0
    %524 = vmatpush1.xpose.msra.mxu0 0.0
    %525 = vmatprep.subr.mxu0 0.0
    %526 = vmatpush1.xpose.msra.mxu0 0.0
    %527 = vmatprep.subr.mxu0 0.0
    %528 = vmatpush1.xpose.msra.mxu0 0.0
    %529 = vmatprep.subr.mxu0 0.0
    %530 = vmatpush1.xpose.msra.mxu0 0.0
    %531 = vmatprep.subr.mxu0 0.0
    %532 = vmatpush1.xpose.msra.mxu0 0.0
    %533 = vmatprep.subr.mxu0 0.0
    %534 = vmatpush1.xpose.msra.mxu0 0.0
    %535 = vmatprep.subr.mxu0 0.0
    %536 = vmatpush1.xpose.msra.mxu0 0.0
    %537 = vmatprep.subr.mxu0 0.0
    %538 = vmatpush1.xpose.msra.mxu0 0.0
    %539 = vmatprep.subr.mxu0 0.0
    %540 = vmatpush1.xpose.msra.mxu0 0.0
    %541 = vmatprep.subr.mxu0 0.0
    %542 = vmatpush1.xpose.msra.mxu0 0.0
    %543 = vmatprep.subr.mxu0 0.0
    %544 = vmatpush1.xpose.msra.mxu0 0.0
    %545 = vmatprep.subr.mxu0 0.0
    %546 = vmatpush1.xpose.msra.mxu0 0.0
    %547 = vmatprep.subr.mxu0 0.0
    %548 = vmatpush1.xpose.msra.mxu0 0.0
    %549 = vmatprep.subr.mxu0 0.0
    %550 = vmatpush1.xpose.msra.mxu0 0.0
    %551 = vmatprep.subr.mxu0 0.0
    %552 = vmatpush1.xpose.msra.mxu0 0.0
    %553 = vmatprep.mubr.f32.mxu0 0.0
    %554 = vmatmul.mubr.f32.gmra.mrb[0].mxu0 %v418
    %v555 = vpop.f32.mrb[0].mxu0
    %v556 = vadd.f32 0.0, %v555
    %v557 = vpop.f32.mrb[0].mxu0
    %558 = vdwg.mxu0
    %v559 = vld [vmem:[#allocation5] sm:$0xff]
    %v560 = vld [vmem:[#allocation5 + $0x8] sm:$0xff]
    %vm561 = vcmask 64512
    %v562 = vsel %vm561, %v486, -inf
    %563 = vmax.xlane.f32.xlu0 %v562
    %v564 = vpop.xlane.xlu0 %563
    %v565 = vsel %vm561, %v556, -inf
    %566 = vmax.xlane.f32.xlu0 %v565
    %v567 = vpop.xlane.xlu0 %566
    %v568 = vmax.f32 %v559, %v564
    %v569 = vmax.f32 %v560, %v567
    %v570 = vsub.f32 %v559, %v568
    %v571 = vsub.f32 %v560, %v569
    %v572 = vmul.f32 %v570, 1.442695
    %v573 = vpow.pop %v572
    %v574 = vmul.f32 %v571, 1.442695
    %v575 = vpow.pop %v574
    %577 = vset.pattern.permute.xlu0 0
    %578 = vperm.xlu0 %577, %v568
    %v579 = vpop.permute.xlu0 %578
    %582 = vset.pattern.permute.xlu0 0
    %583 = vperm.xlu0 %582, %v569
    %v584 = vpop.permute.xlu0 %583
    %v586 = vsub.f32 %v486, %v579
    %v587 = vsub.f32 %v556, %v584
    %v588 = vmul.f32 %v586, 1.442695
    %v589 = vpow.pop %v588
    %v590 = vmul.f32 %v587, 1.442695
    %v591 = vpow.pop %v590
    %v592 = vld [vmem:[#allocation6] sm:$0xff]
    %v593 = vld [vmem:[#allocation6 + $0x8] sm:$0xff]
    %v594 = vmul.f32 %v573, %v592
    %v595 = vmul.f32 %v575, %v593
    %v596 = vsel %vm561, %v589, 0.0
    %597 = vadd.xlane.f32.xlu0 %v596
    %v598 = vpop.xlane.xlu0 %597
    %v599 = vsel %vm561, %v591, 0.0
    %600 = vadd.xlane.f32.xlu0 %v599
    %v601 = vpop.xlane.xlu0 %600
    %v602 = vadd.f32 %v594, %v598
    %v603 = vadd.f32 %v595, %v601
    %vm604 = vcmask 7168
    %605 = vst.msk [vmem:[#allocation6] sm:$0xff] %vm604, %v602
    %606 = vst.msk [vmem:[#allocation6 + $0x8] sm:$0xff] %vm604, %v603
    %v608 = vsel %vm561, %v589, 0
    %610 = vmatprep.subr.mxu0 0.0
    %611 = vmatpush1.msra.mxu0 %v409
    %612 = vmatprep.subr.mxu0 0.0
    %613 = vmatpush1.msra.mxu0 0.0
    %614 = vmatprep.subr.mxu0 0.0
    %615 = vmatpush1.msra.mxu0 0.0
    %616 = vmatprep.subr.mxu0 0.0
    %617 = vmatpush1.msra.mxu0 0.0
    %618 = vmatprep.subr.mxu0 0.0
    %619 = vmatpush1.msra.mxu0 0.0
    %620 = vmatprep.subr.mxu0 0.0
    %621 = vmatpush1.msra.mxu0 0.0
    %622 = vmatprep.subr.mxu0 0.0
    %623 = vmatpush1.msra.mxu0 0.0
    %624 = vmatprep.subr.mxu0 0.0
    %625 = vmatpush1.msra.mxu0 0.0
    %626 = vmatprep.subr.mxu0 0.0
    %627 = vmatpush1.msra.mxu0 0.0
    %628 = vmatprep.subr.mxu0 0.0
    %629 = vmatpush1.msra.mxu0 0.0
    %630 = vmatprep.subr.mxu0 0.0
    %631 = vmatpush1.msra.mxu0 0.0
    %632 = vmatprep.subr.mxu0 0.0
    %633 = vmatpush1.msra.mxu0 0.0
    %634 = vmatprep.subr.mxu0 0.0
    %635 = vmatpush1.msra.mxu0 0.0
    %636 = vmatprep.subr.mxu0 0.0
    %637 = vmatpush1.msra.mxu0 0.0
    %638 = vmatprep.subr.mxu0 0.0
    %639 = vmatpush1.msra.mxu0 0.0
    %640 = vmatprep.subr.mxu0 0.0
    %641 = vmatpush1.msra.mxu0 0.0
    %642 = vmatprep.subr.mxu0 0.0
    %643 = vmatpush1.msra.mxu0 0.0
    %644 = vmatprep.subr.mxu0 0.0
    %645 = vmatpush1.msra.mxu0 0.0
    %646 = vmatprep.subr.mxu0 0.0
    %647 = vmatpush1.msra.mxu0 0.0
    %648 = vmatprep.subr.mxu0 0.0
    %649 = vmatpush1.msra.mxu0 0.0
    %650 = vmatprep.subr.mxu0 0.0
    %651 = vmatpush1.msra.mxu0 0.0
    %652 = vmatprep.subr.mxu0 0.0
    %653 = vmatpush1.msra.mxu0 0.0
    %654 = vmatprep.subr.mxu0 0.0
    %655 = vmatpush1.msra.mxu0 0.0
    %656 = vmatprep.subr.mxu0 0.0
    %657 = vmatpush1.msra.mxu0 0.0
    %658 = vmatprep.subr.mxu0 0.0
    %659 = vmatpush1.msra.mxu0 0.0
    %660 = vmatprep.subr.mxu0 0.0
    %661 = vmatpush1.msra.mxu0 0.0
    %662 = vmatprep.subr.mxu0 0.0
    %663 = vmatpush1.msra.mxu0 0.0
    %664 = vmatprep.subr.mxu0 0.0
    %665 = vmatpush1.msra.mxu0 0.0
    %666 = vmatprep.subr.mxu0 0.0
    %667 = vmatpush1.msra.mxu0 0.0
    %668 = vmatprep.subr.mxu0 0.0
    %669 = vmatpush1.msra.mxu0 0.0
    %670 = vmatprep.subr.mxu0 0.0
    %671 = vmatpush1.msra.mxu0 0.0
    %672 = vmatprep.subr.mxu0 0.0
    %673 = vmatpush1.msra.mxu0 0.0
    %674 = vmatprep.mubr.f32.mxu0 0.0
    %675 = vmatmul.mubr.f32.gmra.mrb[0].mxu0 %v608
    %v676 = vpop.f32.mrb[0].mxu0
    %v677 = vadd.f32 0.0, %v676
    %v678 = vpop.f32.mrb[0].mxu0
    %679 = vdwg.mxu0
    %v681 = vsel %vm561, %v591, 0
    %683 = vmatprep.subr.mxu0 0.0
    %684 = vmatpush1.msra.mxu0 %v414
    %685 = vmatprep.subr.mxu0 0.0
    %686 = vmatpush1.msra.mxu0 0.0
    %687 = vmatprep.subr.mxu0 0.0
    %688 = vmatpush1.msra.mxu0 0.0
    %689 = vmatprep.subr.mxu0 0.0
    %690 = vmatpush1.msra.mxu0 0.0
    %691 = vmatprep.subr.mxu0 0.0
    %692 = vmatpush1.msra.mxu0 0.0
    %693 = vmatprep.subr.mxu0 0.0
    %694 = vmatpush1.msra.mxu0 0.0
    %695 = vmatprep.subr.mxu0 0.0
    %696 = vmatpush1.msra.mxu0 0.0
    %697 = vmatprep.subr.mxu0 0.0
    %698 = vmatpush1.msra.mxu0 0.0
    %699 = vmatprep.subr.mxu0 0.0
    %700 = vmatpush1.msra.mxu0 0.0
    %701 = vmatprep.subr.mxu0 0.0
    %702 = vmatpush1.msra.mxu0 0.0
    %703 = vmatprep.subr.mxu0 0.0
    %704 = vmatpush1.msra.mxu0 0.0
    %705 = vmatprep.subr.mxu0 0.0
    %706 = vmatpush1.msra.mxu0 0.0
    %707 = vmatprep.subr.mxu0 0.0
    %708 = vmatpush1.msra.mxu0 0.0
    %709 = vmatprep.subr.mxu0 0.0
    %710 = vmatpush1.msra.mxu0 0.0
    %711 = vmatprep.subr.mxu0 0.0
    %712 = vmatpush1.msra.mxu0 0.0
    %713 = vmatprep.subr.mxu0 0.0
    %714 = vmatpush1.msra.mxu0 0.0
    %715 = vmatprep.subr.mxu0 0.0
    %716 = vmatpush1.msra.mxu0 0.0
    %717 = vmatprep.subr.mxu0 0.0
    %718 = vmatpush1.msra.mxu0 0.0
    %719 = vmatprep.subr.mxu0 0.0
    %720 = vmatpush1.msra.mxu0 0.0
    %721 = vmatprep.subr.mxu0 0.0
    %722 = vmatpush1.msra.mxu0 0.0
    %723 = vmatprep.subr.mxu0 0.0
    %724 = vmatpush1.msra.mxu0 0.0
    %725 = vmatprep.subr.mxu0 0.0
    %726 = vmatpush1.msra.mxu0 0.0
    %727 = vmatprep.subr.mxu0 0.0
    %728 = vmatpush1.msra.mxu0 0.0
    %729 = vmatprep.subr.mxu0 0.0
    %730 = vmatpush1.msra.mxu0 0.0
    %731 = vmatprep.subr.mxu0 0.0
    %732 = vmatpush1.msra.mxu0 0.0
    %733 = vmatprep.subr.mxu0 0.0
    %734 = vmatpush1.msra.mxu0 0.0
    %735 = vmatprep.subr.mxu0 0.0
    %736 = vmatpush1.msra.mxu0 0.0
    %737 = vmatprep.subr.mxu0 0.0
    %738 = vmatpush1.msra.mxu0 0.0
    %739 = vmatprep.subr.mxu0 0.0
    %740 = vmatpush1.msra.mxu0 0.0
    %741 = vmatprep.subr.mxu0 0.0
    %742 = vmatpush1.msra.mxu0 0.0
    %743 = vmatprep.subr.mxu0 0.0
    %744 = vmatpush1.msra.mxu0 0.0
    %745 = vmatprep.subr.mxu0 0.0
    %746 = vmatpush1.msra.mxu0 0.0
    %747 = vmatprep.mubr.f32.mxu0 0.0
    %748 = vmatmul.mubr.f32.gmra.mrb[0].mxu0 %v681
    %v749 = vpop.f32.mrb[0].mxu0
    %v750 = vadd.f32 0.0, %v749
    %v751 = vpop.f32.mrb[0].mxu0
    %752 = vdwg.mxu0
    %v753 = vld [vmem:[#allocation4] sm:$0xff]
    %v754 = vld [vmem:[#allocation4 + $0x8] sm:$0xff]
    %756 = vset.pattern.permute.xlu0 0
    %757 = vperm.xlu0 %756, %v573
    %v758 = vpop.permute.xlu0 %757
    %761 = vset.pattern.permute.xlu0 0
    %762 = vperm.xlu0 %761, %v575
    %v763 = vpop.permute.xlu0 %762
    %v765 = vmul.f32 %v758, %v753
    %v766 = vmul.f32 %v763, %v754
    %v767 = vadd.f32 %v765, %v677
    %v768 = vadd.f32 %v766, %v750
    %769 = vst [vmem:[#allocation4] sm:$0xff] %v767
    %770 = vst [vmem:[#allocation4 + $0x8] sm:$0xff] %v768
    %771 = vst.msk [vmem:[#allocation5] sm:$0xff] %vm604, %v568
    %772 = vst.msk [vmem:[#allocation5 + $0x8] sm:$0xff] %vm604, %v569
    // Predicated region
    $region66: #{tpu_custom_call.1} parent=1 // pred_check
      %p773 = pneg %p123
    $region67: #{tpu_custom_call.1} parent=1 // pred_check_branch
      %775 = sbr.rel (%p773) target = $region69
    $region68: #{tpu_custom_call.1} parent=1 // pred_region
      %v776 = vld [vmem:[#allocation6] sm:$0xff]
      %v777 = vld [vmem:[#allocation6 + $0x8] sm:$0xff]
      %v778 = vrcp.pop %v776
      %v779 = vrcp.pop %v777
      %v780 = vld [vmem:[#allocation4] sm:$0xff]
      %v781 = vld [vmem:[#allocation4 + $0x8] sm:$0xff]
      %783 = vset.pattern.permute.xlu0 0
      %784 = vperm.xlu0 %783, %v778
      %v785 = vpop.permute.xlu0 %784
      %788 = vset.pattern.permute.xlu0 0
      %789 = vperm.xlu0 %788, %v779
      %v790 = vpop.permute.xlu0 %789
      %v792 = vmul.f32 %v780, %v785
      %v793 = vmul.f32 %v781, %v790
      %v794 = vld [vmem:[#allocation16] sm:$0xff]
      %v795 = vld [vmem:[#allocation16 + $0x8] sm:$0xff]
      %v796 = vld [vmem:[#allocation16 + $0x10] sm:$0xff]
      %v797 = vld [vmem:[#allocation16 + $0x18] sm:$0xff]
      %v798 = vld [vmem:[#allocation16 + $0x20] sm:$0xff]
      %v799 = vld [vmem:[#allocation16 + $0x28] sm:$0xff]
      %v800 = vld [vmem:[#allocation16 + $0x30] sm:$0xff]
      %v801 = vld [vmem:[#allocation16 + $0x38] sm:$0xff]
      %v802 = vld [vmem:[#allocation16 + $0x40] sm:$0xff]
      %v803 = vld [vmem:[#allocation16 + $0x48] sm:$0xff]
      %v804 = vld [vmem:[#allocation16 + $0x50] sm:$0xff]
      %v805 = vld [vmem:[#allocation16 + $0x58] sm:$0xff]
      %v806 = vld [vmem:[#allocation16 + $0x60] sm:$0xff]
      %v807 = vld [vmem:[#allocation16 + $0x68] sm:$0xff]
      %v808 = vld [vmem:[#allocation16 + $0x70] sm:$0xff]
      %v809 = vld [vmem:[#allocation16 + $0x78] sm:$0xff]
      %v810 = vld [vmem:[#allocation18 + $0x2] ss:$0 sm:$0xff]
      %811 = vmatprep.subr.mxu0 0.0
      %812 = vmatpush1.msra.mxu0 %v794
      %813 = vmatprep.subr.mxu0 0.0
      %814 = vmatpush1.msra.mxu0 %v795
      %815 = vmatprep.subr.mxu0 0.0
      %816 = vmatpush1.msra.mxu0 %v796
      %817 = vmatprep.subr.mxu0 0.0
      %818 = vmatpush1.msra.mxu0 %v797
      %819 = vmatprep.subr.mxu0 0.0
      %820 = vmatpush1.msra.mxu0 %v798
      %821 = vmatprep.subr.mxu0 0.0
      %822 = vmatpush1.msra.mxu0 %v799
      %823 = vmatprep.subr.mxu0 0.0
      %824 = vmatpush1.msra.mxu0 %v800
      %825 = vmatprep.subr.mxu0 0.0
      %826 = vmatpush1.msra.mxu0 %v801
      %827 = vmatprep.subr.mxu0 0.0
      %828 = vmatpush1.msra.mxu0 %v802
      %829 = vmatprep.subr.mxu0 0.0
      %830 = vmatpush1.msra.mxu0 %v803
      %831 = vmatprep.subr.mxu0 0.0
      %832 = vmatpush1.msra.mxu0 %v804
      %833 = vmatprep.subr.mxu0 0.0
      %834 = vmatpush1.msra.mxu0 %v805
      %835 = vmatprep.subr.mxu0 0.0
      %836 = vmatpush1.msra.mxu0 %v806
      %837 = vmatprep.subr.mxu0 0.0
      %838 = vmatpush1.msra.mxu0 %v807
      %839 = vmatprep.subr.mxu0 0.0
      %840 = vmatpush1.msra.mxu0 %v808
      %841 = vmatprep.subr.mxu0 0.0
      %842 = vmatpush1.msra.mxu0 %v809
      %843 = vmatprep.subr.mxu0 0.0
      %844 = vmatpush1.msra.mxu0 0.0
      %845 = vmatprep.subr.mxu0 0.0
      %846 = vmatpush1.msra.mxu0 0.0
      %847 = vmatprep.subr.mxu0 0.0
      %848 = vmatpush1.msra.mxu0 0.0
      %849 = vmatprep.subr.mxu0 0.0
      %850 = vmatpush1.msra.mxu0 0.0
      %851 = vmatprep.subr.mxu0 0.0
      %852 = vmatpush1.msra.mxu0 0.0
      %853 = vmatprep.subr.mxu0 0.0
      %854 = vmatpush1.msra.mxu0 0.0
      %855 = vmatprep.subr.mxu0 0.0
      %856 = vmatpush1.msra.mxu0 0.0
      %857 = vmatprep.subr.mxu0 0.0
      %858 = vmatpush1.msra.mxu0 0.0
      %859 = vmatprep.subr.mxu0 0.0
      %860 = vmatpush1.msra.mxu0 0.0
      %861 = vmatprep.subr.mxu0 0.0
      %862 = vmatpush1.msra.mxu0 0.0
      %863 = vmatprep.subr.mxu0 0.0
      %864 = vmatpush1.msra.mxu0 0.0
      %865 = vmatprep.subr.mxu0 0.0
      %866 = vmatpush1.msra.mxu0 0.0
      %867 = vmatprep.subr.mxu0 0.0
      %868 = vmatpush1.msra.mxu0 0.0
      %869 = vmatprep.subr.mxu0 0.0
      %870 = vmatpush1.msra.mxu0 0.0
      %871 = vmatprep.subr.mxu0 0.0
      %872 = vmatpush1.msra.mxu0 0.0
      %873 = vmatprep.subr.mxu0 0.0
      %874 = vmatpush1.msra.mxu0 0.0
      %875 = vmatprep.mubr.f32.mxu0 0.0
      %876 = vmatmul.mubr.f32.gmra.mrb[0].mxu0 %v792
      %v877 = vpop.f32.mrb[0].mxu0
      %v878 = vadd.f32 %v810, %v877
      %v879 = vpop.f32.mrb[0].mxu0
      %880 = vmatprep.mubr.f32.mxu0 0.0
      %881 = vmatmul.mubr.f32.gmra.mrb[0].mxu0 %v793
      %v882 = vpop.f32.mrb[0].mxu0
      %v883 = vadd.f32 %v810, %v882
      %v884 = vpop.f32.mrb[0].mxu0
      %885 = vdwg.mxu0
      %v886 = vld [vmem:[#allocation3] sm:$0xff]
      %v887 = vld [vmem:[#allocation3 + $0x8] sm:$0xff]
      %v888 = vadd.f32 %v878, %v886
      %v889 = vadd.f32 %v883, %v887
      %890 = vst [vmem:[#allocation19] sm:$0xff] %v888
      %891 = vst [vmem:[#allocation19 + $0x8] sm:$0xff] %v889
    $region69: #{tpu_custom_call.1} parent=1 // pred_fallthru
      _
    // Predicated region
    $region70: #{tpu_custom_call.1} parent=1 // pred_check
      _
    $region71: #{tpu_custom_call.1} parent=1 // pred_check_branch
      %893 = sbr.rel (0) target = $region73
    $region72: #{tpu_custom_call.1} parent=1 // pred_region
      %s895 = ssub.s32 256, 256
      %896 = vsyncadd [#allocation9], %s895
      %s897 = sshll.u32 [#allocation19], 4
      %s898 = int_to_ptr.vmem [resolvable:$true] %s897
      %903 = dma.vmem_to_hbm [thread:$0]  %s898, 256, %s8, [#allocation9], 128, 128, 8
    $region73: #{tpu_custom_call.1} parent=1 // pred_fallthru
      _
    // Predicated region
    $region74: #{tpu_custom_call.1} parent=1 // pred_check
      _
    $region75: #{tpu_custom_call.1} parent=1 // pred_check_branch
      %905 = sbr.rel (0) target = $region77
    $region76: #{tpu_custom_call.1} parent=1 // pred_region
      %906 = dma.done [#allocation9], 256
    $region77: #{tpu_custom_call.1} parent=1 // pred_fallthru
      _
    %907 = vsyncpa [#allocation8], 1
    %908 = vsyncpa [#allocation11], 1
    %909 = vsyncpa [#allocation14], 1
    %910 = vsyncpa [#allocation17], 1
    %911 = vsyncpa [#allocation9], 1

</llo_original>
